<compile_context>
chip_gen: v6e
topology: v6e:2x2x1
jax: 0.10.0
libtpu: 0.0.40
codegen_flags: <defaults>
</compile_context>

<pallas_src>
import functools
import math

import jax
import jax.numpy as jnp
from jax.experimental import pallas as pl
from jax.experimental.pallas import tpu as pltpu

# ----------------------------- model dims (small, synthetic) ----------------
B = 2          # batch
S = 8          # sequence length ("longest" padding)
V = 64         # vocab size
D = 32         # hidden size of the text encoder
H = 4          # attention heads
DH = D // H    # head dim
FFN = 64       # feed-forward hidden size
NUM_LAYERS = 2
D_OUT = 32     # feature_resizer output dim
LN_EPS = 1e-12
M = B * S      # flattened token count


# ----------------------------- in-kernel helpers ------------------------------
def _ln(x, g, b, eps=LN_EPS):
    mu = jnp.mean(x, axis=-1, keepdims=True)
    var = jnp.mean((x - mu) * (x - mu), axis=-1, keepdims=True)
    return (x - mu) * jax.lax.rsqrt(var + eps) * g + b


def _gelu(y):
    # tanh approximation of GELU (maps to the EUP tanh slot).
    # TODO(synk): HF BERT default is the exact erf GELU; tanh approx drifts ~1e-3.
    return 0.5 * y * (1.0 + jnp.tanh(0.7978845608028654 * (y + 0.044715 * y * y * y)))


# ----------------------------- fused encoder kernel ---------------------------
def _encoder_kernel(x_ref, eg_ref, eb_ref, m_ref,
                    wqkv_ref, bqkv_ref, wo_ref, bo_ref,
                    ln1g_ref, ln1b_ref, w1_ref, b1_ref,
                    w2_ref, b2_ref, ln2g_ref, ln2b_ref,
                    wr_ref, br_ref, rg_ref, rb_ref,
                    feat_ref, h_ref, *, scale):
    """One grid step == one transformer layer. h_ref carries the hidden state."""
    l = pl.program_id(0)

    # Embedding LayerNorm, only on the first layer step.
    @pl.when(l == 0)
    def _():
        h_ref[...] = _ln(x_ref[...], eg_ref[...], eb_ref[...])

    x = h_ref[...]                                              # [M, D]

    # --- fused QKV projection ---
    qkv = jnp.dot(x, wqkv_ref[...],
                  preferred_element_type=jnp.float32) + bqkv_ref[...]   # [M, 3D]
    mask = m_ref[...]                                           # [M, M] additive

    # --- multi-head self-attention (all batches via block-diagonal mask) ---
    heads = []
    for h in range(H):
        q = qkv[:, h * DH:(h + 1) * DH]                         # [M, DH]
        k = qkv[:, D + h * DH:D + (h + 1) * DH]
        v = qkv[:, 2 * D + h * DH:2 * D + (h + 1) * DH]
        s = jax.lax.dot_general(q, k, (((1,), (1,)), ((), ())),
                                preferred_element_type=jnp.float32)     # q @ k^T
        s = s * scale + mask
        s = s - jnp.max(s, axis=-1, keepdims=True)
        p = jnp.exp(s)
        p = p * pl.reciprocal(jnp.sum(p, axis=-1, keepdims=True), approx=True)
        heads.append(jnp.dot(p, v, preferred_element_type=jnp.float32))
    attn = jnp.concatenate(heads, axis=-1)                      # [M, D]
    attn = jnp.dot(attn, wo_ref[...],
                   preferred_element_type=jnp.float32) + bo_ref[...]

    # --- residual + LN1 (fused) ---
    x1 = _ln(x + attn, ln1g_ref[...], ln1b_ref[...])

    # --- FFN: w1 + GELU + w2 (fused), residual + LN2 (fused) ---
    hdd = _gelu(jnp.dot(x1, w1_ref[...],
                        preferred_element_type=jnp.float32) + b1_ref[...])
    hdd = jnp.dot(hdd, w2_ref[...],
                  preferred_element_type=jnp.float32) + b2_ref[...]
    x2 = _ln(x1 + hdd, ln2g_ref[...], ln2b_ref[...])

    h_ref[...] = x2                                             # carry to next layer

    # --- feature_resizer (Linear + LayerNorm), fused into the same kernel.
    # Written every step; the output block has a constant index map so only
    # the final layer's value is ever written back to HBM.
    feat = jnp.dot(x2, wr_ref[...],
                   preferred_element_type=jnp.float32) + br_ref[...]
    feat_ref[...] = _ln(feat, rg_ref[...], rb_ref[...])


def fused_encoder(params, x_emb, add_mask):
    """x_emb: [B*S, D] (word+pos embeddings, pre-LN); add_mask: [B*S, B*S]."""
    scale = 1.0 / math.sqrt(DH)

    def full2(shape):
        return pl.BlockSpec(shape, lambda l: (0, 0))

    def per_layer(shape):
        return pl.BlockSpec((None,) + shape, lambda l: (l, 0, 0))

    return pl.pallas_call(
        functools.partial(_encoder_kernel, scale=scale),
        out_shape=jax.ShapeDtypeStruct((M, D_OUT), jnp.float32),
        grid=(NUM_LAYERS,),
        in_specs=[
            full2((M, D)),               # x_emb
            full2((1, D)),               # emb_ln_g
            full2((1, D)),               # emb_ln_b
            full2((M, M)),               # additive attention mask
            per_layer((D, 3 * D)),       # wqkv
            per_layer((1, 3 * D)),       # bqkv
            per_layer((D, D)),           # wo
            per_layer((1, D)),           # bo
            per_layer((1, D)),           # ln1_g
            per_layer((1, D)),           # ln1_b
            per_layer((D, FFN)),         # w1
            per_layer((1, FFN)),         # b1
            per_layer((FFN, D)),         # w2
            per_layer((1, D)),           # b2
            per_layer((1, D)),           # ln2_g
            per_layer((1, D)),           # ln2_b
            full2((D, D_OUT)),           # w_r
            full2((1, D_OUT)),           # b_r
            full2((1, D_OUT)),           # r_ln_g
            full2((1, D_OUT)),           # r_ln_b
        ],
        out_specs=pl.BlockSpec((M, D_OUT), lambda l: (0, 0)),
        scratch_shapes=[pltpu.VMEM((M, D), jnp.float32)],
        compiler_params=pltpu.CompilerParams(
            dimension_semantics=("arbitrary",)),     # layers carry a dependency
    )(
        x_emb,
        params["emb_ln_g"].reshape(1, D), params["emb_ln_b"].reshape(1, D),
        add_mask,
        params["wqkv"], params["bqkv"], params["wo"], params["bo"],
        params["ln1_g"], params["ln1_b"], params["w1"], params["b1"],
        params["w2"], params["b2"], params["ln2_g"], params["ln2_b"],
        params["w_r"], params["b_r"].reshape(1, D_OUT),
        params["r_ln_g"].reshape(1, D_OUT), params["r_ln_b"].reshape(1, D_OUT),
    )


# ----------------------------- parameters -------------------------------------
def init_params(key):
    keys = iter(jax.random.split(key, 16))

    def nrm(shape):
        return (0.02 * jax.random.normal(next(keys), shape)).astype(jnp.float32)

    L = NUM_LAYERS
    return {
        "word_emb": nrm((V, D)),
        "pos_emb": nrm((S, D)),
        "emb_ln_g": jnp.ones((D,), jnp.float32),
        "emb_ln_b": jnp.zeros((D,), jnp.float32),
        # stacked per-layer weights; QKV fused along the output dim
        "wqkv": nrm((L, D, 3 * D)),
        "bqkv": jnp.zeros((L, 1, 3 * D), jnp.float32),
        "wo": nrm((L, D, D)),
        "bo": jnp.zeros((L, 1, D), jnp.float32),
        "ln1_g": jnp.ones((L, 1, D), jnp.float32),
        "ln1_b": jnp.zeros((L, 1, D), jnp.float32),
        "w1": nrm((L, D, FFN)),
        "b1": jnp.zeros((L, 1, FFN), jnp.float32),
        "w2": nrm((L, FFN, D)),
        "b2": jnp.zeros((L, 1, D), jnp.float32),
        "ln2_g": jnp.ones((L, 1, D), jnp.float32),
        "ln2_b": jnp.zeros((L, 1, D), jnp.float32),
        # feature_resizer: Linear(D, D_OUT) + LayerNorm(D_OUT, eps=1e-12)
        "w_r": nrm((D, D_OUT)),
        "b_r": jnp.zeros((D_OUT,), jnp.float32),
        "r_ln_g": jnp.ones((D_OUT,), jnp.float32),
        "r_ln_b": jnp.zeros((D_OUT,), jnp.float32),
    }


# ----------------------------- forward -----------------------------------------
def _build_add_mask(attention_mask):
    """Block-diagonal (per-sentence) + key-padding additive mask, [B*S, B*S]."""
    b, s = attention_mask.shape
    m = b * s
    tok_batch = jnp.arange(m, dtype=jnp.int32) // s
    same_batch = tok_batch[:, None] == tok_batch[None, :]
    key_valid = (attention_mask.reshape(-1) == 1)[None, :]
    return jnp.where(same_batch & key_valid, 0.0, -1e9).astype(jnp.float32)


def fctr_text_encoder_forward(params, input_ids, attention_mask):
    """input_ids: [B, S] int32, attention_mask: [B, S] int32 (1 = real token)."""
    b, s = input_ids.shape

    # embeddings (data-dependent gather stays in plain JAX)
    x_emb = (params["word_emb"][input_ids]
             + params["pos_emb"][:s][None, :, :]).reshape(b * s, D)
    add_mask = _build_add_mask(attention_mask)

    # ONE fused pallas_call: emb-LN + all encoder layers + feature_resizer
    feat_flat = fused_encoder(params, x_emb, add_mask)          # [B*S, D_OUT]

    # .transpose(0, 1): [B,S,D_OUT] -> [S,B,D_OUT] (tiny relayout left to XLA)
    feature = jnp.transpose(feat_flat.reshape(b, s, D_OUT), (1, 0, 2))

    padding_mask = attention_mask != 1                          # True = padded

    # TODO(synk): the HF tokenizer (string -> ids) has no Pallas equivalent;
    #             this forward consumes pre-tokenized ids/mask instead.
    return {
        "token": {"input_ids": input_ids, "attention_mask": attention_mask},
        "feature": feature,
        "padding_mask": padding_mask,
    }


# ----------------------------- pure-JAX reference -------------------------------
def reference_forward(params, input_ids, attention_mask):
    b, s = input_ids.shape
    m = b * s
    x = (params["word_emb"][input_ids]
         + params["pos_emb"][:s][None, :, :]).reshape(m, D)

    def ln(v, g, bb):
        mu = v.mean(-1, keepdims=True)
        var = ((v - mu) ** 2).mean(-1, keepdims=True)
        return (v - mu) / jnp.sqrt(var + LN_EPS) * g + bb

    x = ln(x, params["emb_ln_g"], params["emb_ln_b"])
    add_mask = _build_add_mask(attention_mask)
    scale = 1.0 / math.sqrt(DH)
    for l in range(NUM_LAYERS):
        qkv = x @ params["wqkv"][l] + params["bqkv"][l]
        outs = []
        for h in range(H):
            q = qkv[:, h * DH:(h + 1) * DH]
            k = qkv[:, D + h * DH:D + (h + 1) * DH]
            v = qkv[:, 2 * D + h * DH:2 * D + (h + 1) * DH]
            sc = q @ k.T * scale + add_mask
            outs.append(jax.nn.softmax(sc, axis=-1) @ v)
        attn = jnp.concatenate(outs, -1) @ params["wo"][l] + params["bo"][l]
        x = ln(x + attn, params["ln1_g"][l], params["ln1_b"][l])
        hdd = x @ params["w1"][l] + params["b1"][l]
        hdd = 0.5 * hdd * (1.0 + jnp.tanh(0.7978845608028654
                                          * (hdd + 0.044715 * hdd ** 3)))
        hdd = hdd @ params["w2"][l] + params["b2"][l]
        x = ln(x + hdd, params["ln2_g"][l], params["ln2_b"][l])
    feat = ln(x @ params["w_r"] + params["b_r"],
              params["r_ln_g"], params["r_ln_b"])
    return jnp.transpose(feat.reshape(b, s, D_OUT), (1, 0, 2))


# ----------------------------- main --------------------------------------------
if __name__ == "__main__":
    key = jax.random.PRNGKey(0)
    pkey, ikey = jax.random.split(key)
    params = init_params(pkey)

    # deterministic synthetic "tokenized batch": 2 sentences padded to S=8
    input_ids = jax.random.randint(ikey, (B, S), 1, V, dtype=jnp.int32)
    attention_mask = jnp.array(
        [[1, 1, 1, 1, 1, 1, 0, 0],
         [1, 1, 1, 1, 0, 0, 0, 0]], dtype=jnp.int32
    )
    input_ids = input_ids * attention_mask   # pad_token_id = 0

    fwd = jax.jit(functools.partial(fctr_text_encoder_forward, params))
    out = fwd(input_ids, attention_mask)

    jax.block_until_ready(out["feature"])
    jax.block_until_ready(out["padding_mask"])

    assert out["feature"].shape == (S, B, D_OUT)
    assert out["feature"].dtype == jnp.float32
    assert out["padding_mask"].shape == (B, S)
    assert out["padding_mask"].dtype == jnp.bool_
    assert bool(jnp.all(jnp.isfinite(out["feature"])))

    # correctness check against a pure-JAX reference (approx softmax reciprocal
    # in the kernel -> loose-ish tolerance)
    ref = reference_forward(params, input_ids, attention_mask)
    assert bool(jnp.allclose(out["feature"], ref, atol=5e-2, rtol=5e-2))

    print("KERNEL_OK")
</pallas_src>

<mosaic_0001>
module attributes {stable_mosaic.version = 11 : i64} {
  func.func @_encoder_kernel(%arg0: i32, %arg1: memref<16x32xf32, #tpu.memory_space<vmem>>, %arg2: memref<1x32xf32, #tpu.memory_space<vmem>>, %arg3: memref<1x32xf32, #tpu.memory_space<vmem>>, %arg4: memref<16x16xf32, #tpu.memory_space<vmem>>, %arg5: memref<1x32x96xf32, #tpu.memory_space<vmem>>, %arg6: memref<1x1x96xf32, #tpu.memory_space<vmem>>, %arg7: memref<1x32x32xf32, #tpu.memory_space<vmem>>, %arg8: memref<1x1x32xf32, #tpu.memory_space<vmem>>, %arg9: memref<1x1x32xf32, #tpu.memory_space<vmem>>, %arg10: memref<1x1x32xf32, #tpu.memory_space<vmem>>, %arg11: memref<1x32x64xf32, #tpu.memory_space<vmem>>, %arg12: memref<1x1x64xf32, #tpu.memory_space<vmem>>, %arg13: memref<1x64x32xf32, #tpu.memory_space<vmem>>, %arg14: memref<1x1x32xf32, #tpu.memory_space<vmem>>, %arg15: memref<1x1x32xf32, #tpu.memory_space<vmem>>, %arg16: memref<1x1x32xf32, #tpu.memory_space<vmem>>, %arg17: memref<32x32xf32, #tpu.memory_space<vmem>>, %arg18: memref<1x32xf32, #tpu.memory_space<vmem>>, %arg19: memref<1x32xf32, #tpu.memory_space<vmem>>, %arg20: memref<1x32xf32, #tpu.memory_space<vmem>>, %arg21: memref<16x32xf32, #tpu.memory_space<vmem>>, %arg22: memref<16x32xf32, #tpu.memory_space<vmem>>) attributes {dimension_semantics = [#tpu.dimension_semantics<arbitrary>], iteration_bounds = array<i64: 2>, scalar_prefetch = 0 : i64, scratch_operands = 1 : i64, tpu.core_type = #tpu.core_type<tc>, window_params = [{pipeline_mode = #tpu.pipeline_mode<synchronous>, transform_indices = @transform_0, window_bounds = array<i64: 16, 32>}, {pipeline_mode = #tpu.pipeline_mode<synchronous>, transform_indices = @transform_1, window_bounds = array<i64: 1, 32>}, {pipeline_mode = #tpu.pipeline_mode<synchronous>, transform_indices = @transform_2, window_bounds = array<i64: 1, 32>}, {pipeline_mode = #tpu.pipeline_mode<synchronous>, transform_indices = @transform_3, window_bounds = array<i64: 16, 16>}, {transform_indices = @transform_4, window_bounds = array<i64: 1, 32, 96>}, {transform_indices = @transform_5, window_bounds = array<i64: 1, 1, 96>}, {transform_indices = @transform_6, window_bounds = array<i64: 1, 32, 32>}, {transform_indices = @transform_7, window_bounds = array<i64: 1, 1, 32>}, {transform_indices = @transform_8, window_bounds = array<i64: 1, 1, 32>}, {transform_indices = @transform_9, window_bounds = array<i64: 1, 1, 32>}, {transform_indices = @transform_10, window_bounds = array<i64: 1, 32, 64>}, {transform_indices = @transform_11, window_bounds = array<i64: 1, 1, 64>}, {transform_indices = @transform_12, window_bounds = array<i64: 1, 64, 32>}, {transform_indices = @transform_13, window_bounds = array<i64: 1, 1, 32>}, {transform_indices = @transform_14, window_bounds = array<i64: 1, 1, 32>}, {transform_indices = @transform_15, window_bounds = array<i64: 1, 1, 32>}, {pipeline_mode = #tpu.pipeline_mode<synchronous>, transform_indices = @transform_16, window_bounds = array<i64: 32, 32>}, {pipeline_mode = #tpu.pipeline_mode<synchronous>, transform_indices = @transform_17, window_bounds = array<i64: 1, 32>}, {pipeline_mode = #tpu.pipeline_mode<synchronous>, transform_indices = @transform_18, window_bounds = array<i64: 1, 32>}, {pipeline_mode = #tpu.pipeline_mode<synchronous>, transform_indices = @transform_19, window_bounds = array<i64: 1, 32>}, {pipeline_mode = #tpu.pipeline_mode<synchronous>, transform_indices = @transform_20, window_bounds = array<i64: 16, 32>}]} {
    %c0_i32 = arith.constant 0 : i32
    %0 = arith.cmpi eq, %arg0, %c0_i32 : i32
    %1 = arith.extui %0 : i1 to i32
    %c0_i32_0 = arith.constant 0 : i32
    %2 = arith.cmpi ne, %1, %c0_i32_0 : i32
    scf.if %2 {
      %c0_95 = arith.constant 0 : index
      %c0_96 = arith.constant 0 : index
      %210 = vector.load %arg1[%c0_95, %c0_96] : memref<16x32xf32, #tpu.memory_space<vmem>>, vector<16x32xf32>
      %c0_97 = arith.constant 0 : index
      %c0_98 = arith.constant 0 : index
      %211 = vector.load %arg2[%c0_97, %c0_98] : memref<1x32xf32, #tpu.memory_space<vmem>>, vector<1x32xf32>
      %c0_99 = arith.constant 0 : index
      %c0_100 = arith.constant 0 : index
      %212 = vector.load %arg3[%c0_99, %c0_100] : memref<1x32xf32, #tpu.memory_space<vmem>>, vector<1x32xf32>
      %cst_101 = arith.constant dense<0.000000e+00> : vector<16xf32>
      %213 = vector.multi_reduction <add>, %210, %cst_101 [1] : vector<16x32xf32> to vector<16xf32>
      %214 = vector.shape_cast %213 : vector<16xf32> to vector<16x1xf32>
      %cst_102 = arith.constant 3.200000e+01 : f32
      %215 = vector.broadcast %cst_102 : f32 to vector<16x1xf32>
      %216 = arith.divf %214, %215 : vector<16x1xf32>
      %217 = vector.broadcast %216 : vector<16x1xf32> to vector<16x32xf32>
      %218 = arith.subf %210, %217 : vector<16x32xf32>
      %219 = vector.broadcast %216 : vector<16x1xf32> to vector<16x32xf32>
      %220 = arith.subf %210, %219 : vector<16x32xf32>
      %221 = arith.mulf %218, %220 : vector<16x32xf32>
      %cst_103 = arith.constant dense<0.000000e+00> : vector<16xf32>
      %222 = vector.multi_reduction <add>, %221, %cst_103 [1] : vector<16x32xf32> to vector<16xf32>
      %223 = vector.shape_cast %222 : vector<16xf32> to vector<16x1xf32>
      %cst_104 = arith.constant 3.200000e+01 : f32
      %224 = vector.broadcast %cst_104 : f32 to vector<16x1xf32>
      %225 = arith.divf %223, %224 : vector<16x1xf32>
      %226 = vector.broadcast %216 : vector<16x1xf32> to vector<16x32xf32>
      %227 = arith.subf %210, %226 : vector<16x32xf32>
      %cst_105 = arith.constant 9.99999996E-13 : f32
      %228 = vector.broadcast %cst_105 : f32 to vector<16x1xf32>
      %229 = arith.addf %225, %228 : vector<16x1xf32>
      %230 = math.rsqrt %229 : vector<16x1xf32>
      %231 = vector.broadcast %230 : vector<16x1xf32> to vector<16x32xf32>
      %232 = arith.mulf %227, %231 : vector<16x32xf32>
      %233 = vector.broadcast %211 : vector<1x32xf32> to vector<16x32xf32>
      %234 = arith.mulf %232, %233 : vector<16x32xf32>
      %235 = vector.broadcast %212 : vector<1x32xf32> to vector<16x32xf32>
      %236 = arith.addf %234, %235 : vector<16x32xf32>
      %c0_106 = arith.constant 0 : index
      %c0_107 = arith.constant 0 : index
      %237 = vector.load %arg22[%c0_106, %c0_107] : memref<16x32xf32, #tpu.memory_space<vmem>>, vector<16x32xf32>
      tpu.vector_store %arg22[%c0_106, %c0_107], %236 {strides = array<i32>} : memref<16x32xf32, #tpu.memory_space<vmem>>, vector<16x32xf32>,
    } else {
    }
    %c0 = arith.constant 0 : index
    %c0_1 = arith.constant 0 : index
    %3 = vector.load %arg22[%c0, %c0_1] : memref<16x32xf32, #tpu.memory_space<vmem>>, vector<16x32xf32>
    %c0_2 = arith.constant 0 : index
    %c0_3 = arith.constant 0 : index
    %c0_4 = arith.constant 0 : index
    %4 = vector.load %arg5[%c0_2, %c0_3, %c0_4] : memref<1x32x96xf32, #tpu.memory_space<vmem>>, vector<1x32x96xf32>
    %5 = vector.shape_cast %4 : vector<1x32x96xf32> to vector<32x96xf32>
    %cst = arith.constant dense<0.000000e+00> : vector<16x96xf32>
    %6 = tpu.matmul %3, %5, %cst {dimension_numbers = #tpu.dot_dimension_numbers<[1], [0], [0], [1], [0, 0, 1, 1], [], []>} : vector<16x32xf32>, vector<32x96xf32>, vector<16x96xf32> -> vector<16x96xf32>
    %c0_5 = arith.constant 0 : index
    %c0_6 = arith.constant 0 : index
    %c0_7 = arith.constant 0 : index
    %7 = vector.load %arg6[%c0_5, %c0_6, %c0_7] : memref<1x1x96xf32, #tpu.memory_space<vmem>>, vector<1x1x96xf32>
    %8 = vector.shape_cast %7 : vector<1x1x96xf32> to vector<1x96xf32>
    %9 = vector.broadcast %8 : vector<1x96xf32> to vector<16x96xf32>
    %10 = arith.addf %6, %9 : vector<16x96xf32>
    %c0_8 = arith.constant 0 : index
    %c0_9 = arith.constant 0 : index
    %11 = vector.load %arg4[%c0_8, %c0_9] : memref<16x16xf32, #tpu.memory_space<vmem>>, vector<16x16xf32>
    %12 = vector.extract_strided_slice %10 {offsets = [0, 0], sizes = [16, 8], strides = [1, 1]} : vector<16x96xf32> to vector<16x8xf32>
    %13 = vector.extract_strided_slice %10 {offsets = [0, 32], sizes = [16, 8], strides = [1, 1]} : vector<16x96xf32> to vector<16x8xf32>
    %14 = vector.extract_strided_slice %10 {offsets = [0, 64], sizes = [16, 8], strides = [1, 1]} : vector<16x96xf32> to vector<16x8xf32>
    %cst_10 = arith.constant dense<0.000000e+00> : vector<16x16xf32>
    %15 = tpu.matmul %12, %13, %cst_10 {dimension_numbers = #tpu.dot_dimension_numbers<[1], [1], [0], [0], [0, 0, 1, 0], [], []>} : vector<16x8xf32>, vector<16x8xf32>, vector<16x16xf32> -> vector<16x16xf32>
    %cst_11 = arith.constant 0.353553385 : f32
    %16 = vector.broadcast %cst_11 : f32 to vector<16x16xf32>
    %17 = arith.mulf %15, %16 : vector<16x16xf32>
    %18 = arith.addf %17, %11 : vector<16x16xf32>
    %cst_12 = arith.constant dense<0xFF800000> : vector<16xf32>
    %19 = vector.multi_reduction <maximumf>, %18, %cst_12 [1] : vector<16x16xf32> to vector<16xf32>
    %20 = vector.shape_cast %19 : vector<16xf32> to vector<16x1xf32>
    %21 = vector.broadcast %20 : vector<16x1xf32> to vector<16x16xf32>
    %22 = arith.subf %18, %21 : vector<16x16xf32>
    %23 = math.exp %22 : vector<16x16xf32>
    %cst_13 = arith.constant dense<0.000000e+00> : vector<16xf32>
    %24 = vector.multi_reduction <add>, %23, %cst_13 [1] : vector<16x16xf32> to vector<16xf32>
    %25 = vector.shape_cast %24 : vector<16xf32> to vector<16x1xf32>
    %26 = tpu.reciprocal %25 {approx = true} : vector<16x1xf32> -> vector<16x1xf32>
    %27 = vector.broadcast %26 : vector<16x1xf32> to vector<16x16xf32>
    %28 = arith.mulf %23, %27 : vector<16x16xf32>
    %cst_14 = arith.constant dense<0.000000e+00> : vector<16x8xf32>
    %29 = tpu.matmul %28, %14, %cst_14 {dimension_numbers = #tpu.dot_dimension_numbers<[1], [0], [0], [1], [0, 0, 1, 1], [], []>} : vector<16x16xf32>, vector<16x8xf32>, vector<16x8xf32> -> vector<16x8xf32>
    %30 = vector.extract_strided_slice %10 {offsets = [0, 8], sizes = [16, 8], strides = [1, 1]} : vector<16x96xf32> to vector<16x8xf32>
    %31 = vector.extract_strided_slice %10 {offsets = [0, 40], sizes = [16, 8], strides = [1, 1]} : vector<16x96xf32> to vector<16x8xf32>
    %32 = vector.extract_strided_slice %10 {offsets = [0, 72], sizes = [16, 8], strides = [1, 1]} : vector<16x96xf32> to vector<16x8xf32>
    %cst_15 = arith.constant dense<0.000000e+00> : vector<16x16xf32>
    %33 = tpu.matmul %30, %31, %cst_15 {dimension_numbers = #tpu.dot_dimension_numbers<[1], [1], [0], [0], [0, 0, 1, 0], [], []>} : vector<16x8xf32>, vector<16x8xf32>, vector<16x16xf32> -> vector<16x16xf32>
    %cst_16 = arith.constant 0.353553385 : f32
    %34 = vector.broadcast %cst_16 : f32 to vector<16x16xf32>
    %35 = arith.mulf %33, %34 : vector<16x16xf32>
    %36 = arith.addf %35, %11 : vector<16x16xf32>
    %cst_17 = arith.constant dense<0xFF800000> : vector<16xf32>
    %37 = vector.multi_reduction <maximumf>, %36, %cst_17 [1] : vector<16x16xf32> to vector<16xf32>
    %38 = vector.shape_cast %37 : vector<16xf32> to vector<16x1xf32>
    %39 = vector.broadcast %38 : vector<16x1xf32> to vector<16x16xf32>
    %40 = arith.subf %36, %39 : vector<16x16xf32>
    %41 = math.exp %40 : vector<16x16xf32>
    %cst_18 = arith.constant dense<0.000000e+00> : vector<16xf32>
    %42 = vector.multi_reduction <add>, %41, %cst_18 [1] : vector<16x16xf32> to vector<16xf32>
    %43 = vector.shape_cast %42 : vector<16xf32> to vector<16x1xf32>
    %44 = tpu.reciprocal %43 {approx = true} : vector<16x1xf32> -> vector<16x1xf32>
    %45 = vector.broadcast %44 : vector<16x1xf32> to vector<16x16xf32>
    %46 = arith.mulf %41, %45 : vector<16x16xf32>
    %cst_19 = arith.constant dense<0.000000e+00> : vector<16x8xf32>
    %47 = tpu.matmul %46, %32, %cst_19 {dimension_numbers = #tpu.dot_dimension_numbers<[1], [0], [0], [1], [0, 0, 1, 1], [], []>} : vector<16x16xf32>, vector<16x8xf32>, vector<16x8xf32> -> vector<16x8xf32>
    %48 = vector.extract_strided_slice %10 {offsets = [0, 16], sizes = [16, 8], strides = [1, 1]} : vector<16x96xf32> to vector<16x8xf32>
    %49 = vector.extract_strided_slice %10 {offsets = [0, 48], sizes = [16, 8], strides = [1, 1]} : vector<16x96xf32> to vector<16x8xf32>
    %50 = vector.extract_strided_slice %10 {offsets = [0, 80], sizes = [16, 8], strides = [1, 1]} : vector<16x96xf32> to vector<16x8xf32>
    %cst_20 = arith.constant dense<0.000000e+00> : vector<16x16xf32>
    %51 = tpu.matmul %48, %49, %cst_20 {dimension_numbers = #tpu.dot_dimension_numbers<[1], [1], [0], [0], [0, 0, 1, 0], [], []>} : vector<16x8xf32>, vector<16x8xf32>, vector<16x16xf32> -> vector<16x16xf32>
    %cst_21 = arith.constant 0.353553385 : f32
    %52 = vector.broadcast %cst_21 : f32 to vector<16x16xf32>
    %53 = arith.mulf %51, %52 : vector<16x16xf32>
    %54 = arith.addf %53, %11 : vector<16x16xf32>
    %cst_22 = arith.constant dense<0xFF800000> : vector<16xf32>
    %55 = vector.multi_reduction <maximumf>, %54, %cst_22 [1] : vector<16x16xf32> to vector<16xf32>
    %56 = vector.shape_cast %55 : vector<16xf32> to vector<16x1xf32>
    %57 = vector.broadcast %56 : vector<16x1xf32> to vector<16x16xf32>
    %58 = arith.subf %54, %57 : vector<16x16xf32>
    %59 = math.exp %58 : vector<16x16xf32>
    %cst_23 = arith.constant dense<0.000000e+00> : vector<16xf32>
    %60 = vector.multi_reduction <add>, %59, %cst_23 [1] : vector<16x16xf32> to vector<16xf32>
    %61 = vector.shape_cast %60 : vector<16xf32> to vector<16x1xf32>
    %62 = tpu.reciprocal %61 {approx = true} : vector<16x1xf32> -> vector<16x1xf32>
    %63 = vector.broadcast %62 : vector<16x1xf32> to vector<16x16xf32>
    %64 = arith.mulf %59, %63 : vector<16x16xf32>
    %cst_24 = arith.constant dense<0.000000e+00> : vector<16x8xf32>
    %65 = tpu.matmul %64, %50, %cst_24 {dimension_numbers = #tpu.dot_dimension_numbers<[1], [0], [0], [1], [0, 0, 1, 1], [], []>} : vector<16x16xf32>, vector<16x8xf32>, vector<16x8xf32> -> vector<16x8xf32>
    %66 = vector.extract_strided_slice %10 {offsets = [0, 24], sizes = [16, 8], strides = [1, 1]} : vector<16x96xf32> to vector<16x8xf32>
    %67 = vector.extract_strided_slice %10 {offsets = [0, 56], sizes = [16, 8], strides = [1, 1]} : vector<16x96xf32> to vector<16x8xf32>
    %68 = vector.extract_strided_slice %10 {offsets = [0, 88], sizes = [16, 8], strides = [1, 1]} : vector<16x96xf32> to vector<16x8xf32>
    %cst_25 = arith.constant dense<0.000000e+00> : vector<16x16xf32>
    %69 = tpu.matmul %66, %67, %cst_25 {dimension_numbers = #tpu.dot_dimension_numbers<[1], [1], [0], [0], [0, 0, 1, 0], [], []>} : vector<16x8xf32>, vector<16x8xf32>, vector<16x16xf32> -> vector<16x16xf32>
    %cst_26 = arith.constant 0.353553385 : f32
    %70 = vector.broadcast %cst_26 : f32 to vector<16x16xf32>
    %71 = arith.mulf %69, %70 : vector<16x16xf32>
    %72 = arith.addf %71, %11 : vector<16x16xf32>
    %cst_27 = arith.constant dense<0xFF800000> : vector<16xf32>
    %73 = vector.multi_reduction <maximumf>, %72, %cst_27 [1] : vector<16x16xf32> to vector<16xf32>
    %74 = vector.shape_cast %73 : vector<16xf32> to vector<16x1xf32>
    %75 = vector.broadcast %74 : vector<16x1xf32> to vector<16x16xf32>
    %76 = arith.subf %72, %75 : vector<16x16xf32>
    %77 = math.exp %76 : vector<16x16xf32>
    %cst_28 = arith.constant dense<0.000000e+00> : vector<16xf32>
    %78 = vector.multi_reduction <add>, %77, %cst_28 [1] : vector<16x16xf32> to vector<16xf32>
    %79 = vector.shape_cast %78 : vector<16xf32> to vector<16x1xf32>
    %80 = tpu.reciprocal %79 {approx = true} : vector<16x1xf32> -> vector<16x1xf32>
    %81 = vector.broadcast %80 : vector<16x1xf32> to vector<16x16xf32>
    %82 = arith.mulf %77, %81 : vector<16x16xf32>
    %cst_29 = arith.constant dense<0.000000e+00> : vector<16x8xf32>
    %83 = tpu.matmul %82, %68, %cst_29 {dimension_numbers = #tpu.dot_dimension_numbers<[1], [0], [0], [1], [0, 0, 1, 1], [], []>} : vector<16x16xf32>, vector<16x8xf32>, vector<16x8xf32> -> vector<16x8xf32>
    %84 = tpu.concatenate %29, %47, %65, %83 in 1 : vector<16x8xf32>, vector<16x8xf32>, vector<16x8xf32>, vector<16x8xf32> -> vector<16x32xf32>
    %c0_30 = arith.constant 0 : index
    %c0_31 = arith.constant 0 : index
    %c0_32 = arith.constant 0 : index
    %85 = vector.load %arg7[%c0_30, %c0_31, %c0_32] : memref<1x32x32xf32, #tpu.memory_space<vmem>>, vector<1x32x32xf32>
    %86 = vector.shape_cast %85 : vector<1x32x32xf32> to vector<32x32xf32>
    %cst_33 = arith.constant dense<0.000000e+00> : vector<16x32xf32>
    %87 = tpu.matmul %84, %86, %cst_33 {dimension_numbers = #tpu.dot_dimension_numbers<[1], [0], [0], [1], [0, 0, 1, 1], [], []>} : vector<16x32xf32>, vector<32x32xf32>, vector<16x32xf32> -> vector<16x32xf32>
    %c0_34 = arith.constant 0 : index
    %c0_35 = arith.constant 0 : index
    %c0_36 = arith.constant 0 : index
    %88 = vector.load %arg8[%c0_34, %c0_35, %c0_36] : memref<1x1x32xf32, #tpu.memory_space<vmem>>, vector<1x1x32xf32>
    %89 = vector.shape_cast %88 : vector<1x1x32xf32> to vector<1x32xf32>
    %90 = vector.broadcast %89 : vector<1x32xf32> to vector<16x32xf32>
    %91 = arith.addf %87, %90 : vector<16x32xf32>
    %92 = arith.addf %3, %91 : vector<16x32xf32>
    %c0_37 = arith.constant 0 : index
    %c0_38 = arith.constant 0 : index
    %c0_39 = arith.constant 0 : index
    %93 = vector.load %arg9[%c0_37, %c0_38, %c0_39] : memref<1x1x32xf32, #tpu.memory_space<vmem>>, vector<1x1x32xf32>
    %94 = vector.shape_cast %93 : vector<1x1x32xf32> to vector<1x32xf32>
    %c0_40 = arith.constant 0 : index
    %c0_41 = arith.constant 0 : index
    %c0_42 = arith.constant 0 : index
    %95 = vector.load %arg10[%c0_40, %c0_41, %c0_42] : memref<1x1x32xf32, #tpu.memory_space<vmem>>, vector<1x1x32xf32>
    %96 = vector.shape_cast %95 : vector<1x1x32xf32> to vector<1x32xf32>
    %cst_43 = arith.constant dense<0.000000e+00> : vector<16xf32>
    %97 = vector.multi_reduction <add>, %92, %cst_43 [1] : vector<16x32xf32> to vector<16xf32>
    %98 = vector.shape_cast %97 : vector<16xf32> to vector<16x1xf32>
    %cst_44 = arith.constant 3.200000e+01 : f32
    %99 = vector.broadcast %cst_44 : f32 to vector<16x1xf32>
    %100 = arith.divf %98, %99 : vector<16x1xf32>
    %101 = vector.broadcast %100 : vector<16x1xf32> to vector<16x32xf32>
    %102 = arith.subf %92, %101 : vector<16x32xf32>
    %103 = vector.broadcast %100 : vector<16x1xf32> to vector<16x32xf32>
    %104 = arith.subf %92, %103 : vector<16x32xf32>
    %105 = arith.mulf %102, %104 : vector<16x32xf32>
    %cst_45 = arith.constant dense<0.000000e+00> : vector<16xf32>
    %106 = vector.multi_reduction <add>, %105, %cst_45 [1] : vector<16x32xf32> to vector<16xf32>
    %107 = vector.shape_cast %106 : vector<16xf32> to vector<16x1xf32>
    %cst_46 = arith.constant 3.200000e+01 : f32
    %108 = vector.broadcast %cst_46 : f32 to vector<16x1xf32>
    %109 = arith.divf %107, %108 : vector<16x1xf32>
    %110 = vector.broadcast %100 : vector<16x1xf32> to vector<16x32xf32>
    %111 = arith.subf %92, %110 : vector<16x32xf32>
    %cst_47 = arith.constant 9.99999996E-13 : f32
    %112 = vector.broadcast %cst_47 : f32 to vector<16x1xf32>
    %113 = arith.addf %109, %112 : vector<16x1xf32>
    %114 = math.rsqrt %113 : vector<16x1xf32>
    %115 = vector.broadcast %114 : vector<16x1xf32> to vector<16x32xf32>
    %116 = arith.mulf %111, %115 : vector<16x32xf32>
    %117 = vector.broadcast %94 : vector<1x32xf32> to vector<16x32xf32>
    %118 = arith.mulf %116, %117 : vector<16x32xf32>
    %119 = vector.broadcast %96 : vector<1x32xf32> to vector<16x32xf32>
    %120 = arith.addf %118, %119 : vector<16x32xf32>
    %c0_48 = arith.constant 0 : index
    %c0_49 = arith.constant 0 : index
    %c0_50 = arith.constant 0 : index
    %121 = vector.load %arg11[%c0_48, %c0_49, %c0_50] : memref<1x32x64xf32, #tpu.memory_space<vmem>>, vector<1x32x64xf32>
    %122 = vector.shape_cast %121 : vector<1x32x64xf32> to vector<32x64xf32>
    %cst_51 = arith.constant dense<0.000000e+00> : vector<16x64xf32>
    %123 = tpu.matmul %120, %122, %cst_51 {dimension_numbers = #tpu.dot_dimension_numbers<[1], [0], [0], [1], [0, 0, 1, 1], [], []>} : vector<16x32xf32>, vector<32x64xf32>, vector<16x64xf32> -> vector<16x64xf32>
    %c0_52 = arith.constant 0 : index
    %c0_53 = arith.constant 0 : index
    %c0_54 = arith.constant 0 : index
    %124 = vector.load %arg12[%c0_52, %c0_53, %c0_54] : memref<1x1x64xf32, #tpu.memory_space<vmem>>, vector<1x1x64xf32>
    %125 = vector.shape_cast %124 : vector<1x1x64xf32> to vector<1x64xf32>
    %126 = vector.broadcast %125 : vector<1x64xf32> to vector<16x64xf32>
    %127 = arith.addf %123, %126 : vector<16x64xf32>
    %cst_55 = arith.constant 5.000000e-01 : f32
    %128 = vector.broadcast %cst_55 : f32 to vector<16x64xf32>
    %129 = arith.mulf %128, %127 : vector<16x64xf32>
    %cst_56 = arith.constant 4.471500e-02 : f32
    %130 = vector.broadcast %cst_56 : f32 to vector<16x64xf32>
    %131 = arith.mulf %130, %127 : vector<16x64xf32>
    %132 = arith.mulf %131, %127 : vector<16x64xf32>
    %133 = arith.mulf %132, %127 : vector<16x64xf32>
    %134 = arith.addf %127, %133 : vector<16x64xf32>
    %cst_57 = arith.constant 0.797884583 : f32
    %135 = vector.broadcast %cst_57 : f32 to vector<16x64xf32>
    %136 = arith.mulf %135, %134 : vector<16x64xf32>
    %137 = math.tanh %136 : vector<16x64xf32>
    %cst_58 = arith.constant 1.000000e+00 : f32
    %138 = vector.broadcast %cst_58 : f32 to vector<16x64xf32>
    %139 = arith.addf %138, %137 : vector<16x64xf32>
    %140 = arith.mulf %129, %139 : vector<16x64xf32>
    %c0_59 = arith.constant 0 : index
    %c0_60 = arith.constant 0 : index
    %c0_61 = arith.constant 0 : index
    %141 = vector.load %arg13[%c0_59, %c0_60, %c0_61] : memref<1x64x32xf32, #tpu.memory_space<vmem>>, vector<1x64x32xf32>
    %142 = vector.shape_cast %141 : vector<1x64x32xf32> to vector<64x32xf32>
    %cst_62 = arith.constant dense<0.000000e+00> : vector<16x32xf32>
    %143 = tpu.matmul %140, %142, %cst_62 {dimension_numbers = #tpu.dot_dimension_numbers<[1], [0], [0], [1], [0, 0, 1, 1], [], []>} : vector<16x64xf32>, vector<64x32xf32>, vector<16x32xf32> -> vector<16x32xf32>
    %c0_63 = arith.constant 0 : index
    %c0_64 = arith.constant 0 : index
    %c0_65 = arith.constant 0 : index
    %144 = vector.load %arg14[%c0_63, %c0_64, %c0_65] : memref<1x1x32xf32, #tpu.memory_space<vmem>>, vector<1x1x32xf32>
    %145 = vector.shape_cast %144 : vector<1x1x32xf32> to vector<1x32xf32>
    %146 = vector.broadcast %145 : vector<1x32xf32> to vector<16x32xf32>
    %147 = arith.addf %143, %146 : vector<16x32xf32>
    %148 = arith.addf %120, %147 : vector<16x32xf32>
    %c0_66 = arith.constant 0 : index
    %c0_67 = arith.constant 0 : index
    %c0_68 = arith.constant 0 : index
    %149 = vector.load %arg15[%c0_66, %c0_67, %c0_68] : memref<1x1x32xf32, #tpu.memory_space<vmem>>, vector<1x1x32xf32>
    %150 = vector.shape_cast %149 : vector<1x1x32xf32> to vector<1x32xf32>
    %c0_69 = arith.constant 0 : index
    %c0_70 = arith.constant 0 : index
    %c0_71 = arith.constant 0 : index
    %151 = vector.load %arg16[%c0_69, %c0_70, %c0_71] : memref<1x1x32xf32, #tpu.memory_space<vmem>>, vector<1x1x32xf32>
    %152 = vector.shape_cast %151 : vector<1x1x32xf32> to vector<1x32xf32>
    %cst_72 = arith.constant dense<0.000000e+00> : vector<16xf32>
    %153 = vector.multi_reduction <add>, %148, %cst_72 [1] : vector<16x32xf32> to vector<16xf32>
    %154 = vector.shape_cast %153 : vector<16xf32> to vector<16x1xf32>
    %cst_73 = arith.constant 3.200000e+01 : f32
    %155 = vector.broadcast %cst_73 : f32 to vector<16x1xf32>
    %156 = arith.divf %154, %155 : vector<16x1xf32>
    %157 = vector.broadcast %156 : vector<16x1xf32> to vector<16x32xf32>
    %158 = arith.subf %148, %157 : vector<16x32xf32>
    %159 = vector.broadcast %156 : vector<16x1xf32> to vector<16x32xf32>
    %160 = arith.subf %148, %159 : vector<16x32xf32>
    %161 = arith.mulf %158, %160 : vector<16x32xf32>
    %cst_74 = arith.constant dense<0.000000e+00> : vector<16xf32>
    %162 = vector.multi_reduction <add>, %161, %cst_74 [1] : vector<16x32xf32> to vector<16xf32>
    %163 = vector.shape_cast %162 : vector<16xf32> to vector<16x1xf32>
    %cst_75 = arith.constant 3.200000e+01 : f32
    %164 = vector.broadcast %cst_75 : f32 to vector<16x1xf32>
    %165 = arith.divf %163, %164 : vector<16x1xf32>
    %166 = vector.broadcast %156 : vector<16x1xf32> to vector<16x32xf32>
    %167 = arith.subf %148, %166 : vector<16x32xf32>
    %cst_76 = arith.constant 9.99999996E-13 : f32
    %168 = vector.broadcast %cst_76 : f32 to vector<16x1xf32>
    %169 = arith.addf %165, %168 : vector<16x1xf32>
    %170 = math.rsqrt %169 : vector<16x1xf32>
    %171 = vector.broadcast %170 : vector<16x1xf32> to vector<16x32xf32>
    %172 = arith.mulf %167, %171 : vector<16x32xf32>
    %173 = vector.broadcast %150 : vector<1x32xf32> to vector<16x32xf32>
    %174 = arith.mulf %172, %173 : vector<16x32xf32>
    %175 = vector.broadcast %152 : vector<1x32xf32> to vector<16x32xf32>
    %176 = arith.addf %174, %175 : vector<16x32xf32>
    %c0_77 = arith.constant 0 : index
    %c0_78 = arith.constant 0 : index
    %177 = vector.load %arg22[%c0_77, %c0_78] : memref<16x32xf32, #tpu.memory_space<vmem>>, vector<16x32xf32>
    tpu.vector_store %arg22[%c0_77, %c0_78], %176 {strides = array<i32>} : memref<16x32xf32, #tpu.memory_space<vmem>>, vector<16x32xf32>,
    %c0_79 = arith.constant 0 : index
    %c0_80 = arith.constant 0 : index
    %178 = vector.load %arg17[%c0_79, %c0_80] : memref<32x32xf32, #tpu.memory_space<vmem>>, vector<32x32xf32>
    %cst_81 = arith.constant dense<0.000000e+00> : vector<16x32xf32>
    %179 = tpu.matmul %176, %178, %cst_81 {dimension_numbers = #tpu.dot_dimension_numbers<[1], [0], [0], [1], [0, 0, 1, 1], [], []>} : vector<16x32xf32>, vector<32x32xf32>, vector<16x32xf32> -> vector<16x32xf32>
    %c0_82 = arith.constant 0 : index
    %c0_83 = arith.constant 0 : index
    %180 = vector.load %arg18[%c0_82, %c0_83] : memref<1x32xf32, #tpu.memory_space<vmem>>, vector<1x32xf32>
    %181 = vector.broadcast %180 : vector<1x32xf32> to vector<16x32xf32>
    %182 = arith.addf %179, %181 : vector<16x32xf32>
    %c0_84 = arith.constant 0 : index
    %c0_85 = arith.constant 0 : index
    %183 = vector.load %arg19[%c0_84, %c0_85] : memref<1x32xf32, #tpu.memory_space<vmem>>, vector<1x32xf32>
    %c0_86 = arith.constant 0 : index
    %c0_87 = arith.constant 0 : index
    %184 = vector.load %arg20[%c0_86, %c0_87] : memref<1x32xf32, #tpu.memory_space<vmem>>, vector<1x32xf32>
    %cst_88 = arith.constant dense<0.000000e+00> : vector<16xf32>
    %185 = vector.multi_reduction <add>, %182, %cst_88 [1] : vector<16x32xf32> to vector<16xf32>
    %186 = vector.shape_cast %185 : vector<16xf32> to vector<16x1xf32>
    %cst_89 = arith.constant 3.200000e+01 : f32
    %187 = vector.broadcast %cst_89 : f32 to vector<16x1xf32>
    %188 = arith.divf %186, %187 : vector<16x1xf32>
    %189 = vector.broadcast %188 : vector<16x1xf32> to vector<16x32xf32>
    %190 = arith.subf %182, %189 : vector<16x32xf32>
    %191 = vector.broadcast %188 : vector<16x1xf32> to vector<16x32xf32>
    %192 = arith.subf %182, %191 : vector<16x32xf32>
    %193 = arith.mulf %190, %192 : vector<16x32xf32>
    %cst_90 = arith.constant dense<0.000000e+00> : vector<16xf32>
    %194 = vector.multi_reduction <add>, %193, %cst_90 [1] : vector<16x32xf32> to vector<16xf32>
    %195 = vector.shape_cast %194 : vector<16xf32> to vector<16x1xf32>
    %cst_91 = arith.constant 3.200000e+01 : f32
    %196 = vector.broadcast %cst_91 : f32 to vector<16x1xf32>
    %197 = arith.divf %195, %196 : vector<16x1xf32>
    %198 = vector.broadcast %188 : vector<16x1xf32> to vector<16x32xf32>
    %199 = arith.subf %182, %198 : vector<16x32xf32>
    %cst_92 = arith.constant 9.99999996E-13 : f32
    %200 = vector.broadcast %cst_92 : f32 to vector<16x1xf32>
    %201 = arith.addf %197, %200 : vector<16x1xf32>
    %202 = math.rsqrt %201 : vector<16x1xf32>
    %203 = vector.broadcast %202 : vector<16x1xf32> to vector<16x32xf32>
    %204 = arith.mulf %199, %203 : vector<16x32xf32>
    %205 = vector.broadcast %183 : vector<1x32xf32> to vector<16x32xf32>
    %206 = arith.mulf %204, %205 : vector<16x32xf32>
    %207 = vector.broadcast %184 : vector<1x32xf32> to vector<16x32xf32>
    %208 = arith.addf %206, %207 : vector<16x32xf32>
    %c0_93 = arith.constant 0 : index
    %c0_94 = arith.constant 0 : index
    %209 = vector.load %arg21[%c0_93, %c0_94] : memref<16x32xf32, #tpu.memory_space<vmem>>, vector<16x32xf32>
    tpu.vector_store %arg21[%c0_93, %c0_94], %208 {strides = array<i32>} : memref<16x32xf32, #tpu.memory_space<vmem>>, vector<16x32xf32>,
    return
  }
  func.func @transform_0(%arg0: i32) -> (i32, i32) {
    %c0_i32 = arith.constant 0 : i32
    %c0_i32_0 = arith.constant 0 : i32
    %c0_i32_1 = arith.constant 0 : i32
    return %c0_i32, %c0_i32_0 : i32, i32
  }
  func.func @transform_1(%arg0: i32) -> (i32, i32) {
    %c0_i32 = arith.constant 0 : i32
    %c0_i32_0 = arith.constant 0 : i32
    %c0_i32_1 = arith.constant 0 : i32
    return %c0_i32, %c0_i32_0 : i32, i32
  }
  func.func @transform_2(%arg0: i32) -> (i32, i32) {
    %c0_i32 = arith.constant 0 : i32
    %c0_i32_0 = arith.constant 0 : i32
    %c0_i32_1 = arith.constant 0 : i32
    return %c0_i32, %c0_i32_0 : i32, i32
  }
  func.func @transform_3(%arg0: i32) -> (i32, i32) {
    %c0_i32 = arith.constant 0 : i32
    %c0_i32_0 = arith.constant 0 : i32
    %c0_i32_1 = arith.constant 0 : i32
    return %c0_i32, %c0_i32_0 : i32, i32
  }
  func.func @transform_4(%arg0: i32) -> (i32, i32, i32) {
    %c0_i32 = arith.constant 0 : i32
    %c0_i32_0 = arith.constant 0 : i32
    %c0_i32_1 = arith.constant 0 : i32
    return %arg0, %c0_i32, %c0_i32_0 : i32, i32, i32
  }
  func.func @transform_5(%arg0: i32) -> (i32, i32, i32) {
    %c0_i32 = arith.constant 0 : i32
    %c0_i32_0 = arith.constant 0 : i32
    %c0_i32_1 = arith.constant 0 : i32
    return %arg0, %c0_i32, %c0_i32_0 : i32, i32, i32
  }
  func.func @transform_6(%arg0: i32) -> (i32, i32, i32) {
    %c0_i32 = arith.constant 0 : i32
    %c0_i32_0 = arith.constant 0 : i32
    %c0_i32_1 = arith.constant 0 : i32
    return %arg0, %c0_i32, %c0_i32_0 : i32, i32, i32
  }
  func.func @transform_7(%arg0: i32) -> (i32, i32, i32) {
    %c0_i32 = arith.constant 0 : i32
    %c0_i32_0 = arith.constant 0 : i32
    %c0_i32_1 = arith.constant 0 : i32
    return %arg0, %c0_i32, %c0_i32_0 : i32, i32, i32
  }
  func.func @transform_8(%arg0: i32) -> (i32, i32, i32) {
    %c0_i32 = arith.constant 0 : i32
    %c0_i32_0 = arith.constant 0 : i32
    %c0_i32_1 = arith.constant 0 : i32
    return %arg0, %c0_i32, %c0_i32_0 : i32, i32, i32
  }
  func.func @transform_9(%arg0: i32) -> (i32, i32, i32) {
    %c0_i32 = arith.constant 0 : i32
    %c0_i32_0 = arith.constant 0 : i32
    %c0_i32_1 = arith.constant 0 : i32
    return %arg0, %c0_i32, %c0_i32_0 : i32, i32, i32
  }
  func.func @transform_10(%arg0: i32) -> (i32, i32, i32) {
    %c0_i32 = arith.constant 0 : i32
    %c0_i32_0 = arith.constant 0 : i32
    %c0_i32_1 = arith.constant 0 : i32
    return %arg0, %c0_i32, %c0_i32_0 : i32, i32, i32
  }
  func.func @transform_11(%arg0: i32) -> (i32, i32, i32) {
    %c0_i32 = arith.constant 0 : i32
    %c0_i32_0 = arith.constant 0 : i32
    %c0_i32_1 = arith.constant 0 : i32
    return %arg0, %c0_i32, %c0_i32_0 : i32, i32, i32
  }
  func.func @transform_12(%arg0: i32) -> (i32, i32, i32) {
    %c0_i32 = arith.constant 0 : i32
    %c0_i32_0 = arith.constant 0 : i32
    %c0_i32_1 = arith.constant 0 : i32
    return %arg0, %c0_i32, %c0_i32_0 : i32, i32, i32
  }
  func.func @transform_13(%arg0: i32) -> (i32, i32, i32) {
    %c0_i32 = arith.constant 0 : i32
    %c0_i32_0 = arith.constant 0 : i32
    %c0_i32_1 = arith.constant 0 : i32
    return %arg0, %c0_i32, %c0_i32_0 : i32, i32, i32
  }
  func.func @transform_14(%arg0: i32) -> (i32, i32, i32) {
    %c0_i32 = arith.constant 0 : i32
    %c0_i32_0 = arith.constant 0 : i32
    %c0_i32_1 = arith.constant 0 : i32
    return %arg0, %c0_i32, %c0_i32_0 : i32, i32, i32
  }
  func.func @transform_15(%arg0: i32) -> (i32, i32, i32) {
    %c0_i32 = arith.constant 0 : i32
    %c0_i32_0 = arith.constant 0 : i32
    %c0_i32_1 = arith.constant 0 : i32
    return %arg0, %c0_i32, %c0_i32_0 : i32, i32, i32
  }
  func.func @transform_16(%arg0: i32) -> (i32, i32) {
    %c0_i32 = arith.constant 0 : i32
    %c0_i32_0 = arith.constant 0 : i32
    %c0_i32_1 = arith.constant 0 : i32
    return %c0_i32, %c0_i32_0 : i32, i32
  }
  func.func @transform_17(%arg0: i32) -> (i32, i32) {
    %c0_i32 = arith.constant 0 : i32
    %c0_i32_0 = arith.constant 0 : i32
    %c0_i32_1 = arith.constant 0 : i32
    return %c0_i32, %c0_i32_0 : i32, i32
  }
  func.func @transform_18(%arg0: i32) -> (i32, i32) {
    %c0_i32 = arith.constant 0 : i32
    %c0_i32_0 = arith.constant 0 : i32
    %c0_i32_1 = arith.constant 0 : i32
    return %c0_i32, %c0_i32_0 : i32, i32
  }
  func.func @transform_19(%arg0: i32) -> (i32, i32) {
    %c0_i32 = arith.constant 0 : i32
    %c0_i32_0 = arith.constant 0 : i32
    %c0_i32_1 = arith.constant 0 : i32
    return %c0_i32, %c0_i32_0 : i32, i32
  }
  func.func @transform_20(%arg0: i32) -> (i32, i32) {
    %c0_i32 = arith.constant 0 : i32
    %c0_i32_0 = arith.constant 0 : i32
    %c0_i32_1 = arith.constant 0 : i32
    return %c0_i32, %c0_i32_0 : i32, i32
  }
}

</mosaic_0001>

<llo_original>
// kernel: fctr_text_encoder_forward.1
$region0: #{fctr_text_encoder_forward.1}
  #allocation0 [shape = 'u32[]', space=smem, size = 0x4, offset = 0x4, fixed_abs, tag = 'smem constant byte address 0x4 - core index']
  #allocation1 [shape = 'u32[144,128]{1,0:T(1,128)}', space=vmem, size = 0x12000, scoped, tag = 'internal scratch']
  #allocation2 [shape = 'f32[16,32]{1,0:T(8,128)}', space=vmem, size = 0x2000, scoped, tag = 'scratch operand']
  %s0 = inlined_call_operand.vmem [shape: f32[16,32], index: 0, kind: input, shape index: {}]
  %s1 = inlined_call_operand.vmem [shape: f32[1,32], index: 1, kind: input, shape index: {}, may-alias: {1,18}]
  %s2 = inlined_call_operand.vmem [shape: f32[1,32], index: 2, kind: input, shape index: {}, may-alias: {2,17,19}]
  %s3 = inlined_call_operand.vmem [shape: f32[16,16], index: 3, kind: input, shape index: {}]
  %s4 = inlined_call_operand.vmem [shape: f32[2,32,96], index: 4, kind: input, shape index: {}]
  %s5 = inlined_call_operand.vmem [shape: f32[2,1,96], index: 5, kind: input, shape index: {}]
  %s6 = inlined_call_operand.hbm [shape: f32[2,32,32], index: 6, kind: input, shape index: {}]
  %s7 = inlined_call_operand.vmem [shape: f32[2,1,32], index: 7, kind: input, shape index: {}, may-alias: {7,9,13,15}]
  %s8 = inlined_call_operand.vmem [shape: f32[2,1,32], index: 8, kind: input, shape index: {}, may-alias: {8,14}]
  %s9 = inlined_call_operand.vmem [shape: f32[2,1,32], index: 9, kind: input, shape index: {}, may-alias: {7,9,13,15}]
  %s10 = inlined_call_operand.hbm [shape: f32[2,32,64], index: 10, kind: input, shape index: {}]
  %s11 = inlined_call_operand.vmem [shape: f32[2,1,64], index: 11, kind: input, shape index: {}]
  %s12 = inlined_call_operand.vmem [shape: f32[2,64,32], index: 12, kind: input, shape index: {}]
  %s13 = inlined_call_operand.vmem [shape: f32[2,1,32], index: 13, kind: input, shape index: {}, may-alias: {7,9,13,15}]
  %s14 = inlined_call_operand.vmem [shape: f32[2,1,32], index: 14, kind: input, shape index: {}, may-alias: {8,14}]
  %s15 = inlined_call_operand.vmem [shape: f32[2,1,32], index: 15, kind: input, shape index: {}, may-alias: {7,9,13,15}]
  %s16 = inlined_call_operand.vmem [shape: f32[32,32], index: 16, kind: input, shape index: {}]
  %s17 = inlined_call_operand.vmem [shape: f32[1,32], index: 17, kind: input, shape index: {}, may-alias: {2,17,19}]
  %s18 = inlined_call_operand.vmem [shape: f32[1,32], index: 18, kind: input, shape index: {}, may-alias: {1,18}]
  %s19 = inlined_call_operand.vmem [shape: f32[1,32], index: 19, kind: input, shape index: {}, may-alias: {2,17,19}]
  %s20 = inlined_call_operand.vmem [shape: f32[16,32], index: 20, kind: output, shape index: {}]
  %s21 = sld [smem:[#allocation0]]
  $region125: #{fctr_text_encoder_forward.1} parent=0
    _
  %s23 = ssub.s32 1, %s21
  %s24 = scalar_select 0, %s23, %s21
  $region1: #{fctr_text_encoder_forward.1} parent=0
    #allocation3 [shape = 'u8[32768]{0}', space=vmem, size = 0x8000, scoped, tag = 'input window, operand 6']
    #allocation4 [shape = 's32[2]{0}', space=sflag, size = 0x8, scoped, tag = 'scoped memory for fctr_text_encoder_forward.1']
    #allocation5 [shape = 'u8[32768]{0}', space=vmem, size = 0x8000, scoped, tag = 'input window, operand 10']
    #allocation6 [shape = 's32[2]{0}', space=sflag, size = 0x8, scoped, tag = 'scoped memory for fctr_text_encoder_forward.1']
    %25 = vsyncpa [#allocation4], 0
    %s26 = scalar_lea.sflag [#allocation4], 1
    %27 = vsyncpa %s26, 0
    %28 = vsyncpa [#allocation6], 0
    %s29 = scalar_lea.sflag [#allocation6], 1
    %30 = vsyncpa %s29, 0
    loop: start=0, step=1, limit=4
    $region2: #{fctr_text_encoder_forward.1} parent=1 // loop_pre_header
      _
    $region3: #{fctr_text_encoder_forward.1} parent=1 // loop_header
      %s32 = sphi 0, %s36
      %p33 = scmp.ge.s32.totalorder %s32, 4
      %s40 = sphi 0, %s40
      %s42 = sphi 0, %s40
      %s43 = sphi 0, %s42
      %s57 = sphi 0, %s43
      %s61 = sphi 0, %s61
      %s63 = sphi 0, %s61
      %s64 = sphi 0, %s63
      %s78 = sphi 0, %s64
      %s82 = sphi 0, %s82
      %s84 = sphi 0, %s82
      %s85 = sphi 0, %s84
      %s99 = sphi 0, %s85
      %s103 = sphi 0, %s103
      %s105 = sphi 0, %s103
      %s106 = sphi 0, %s105
      %s120 = sphi 0, %s106
      %s126 = sphi 0, %s128
      %s129 = sphi 0, %s126
      %s130 = sphi 0, %s129
      %s146 = sphi 0, %s130
      %s152 = sphi 0, %s154
      %s155 = sphi 0, %s152
      %s156 = sphi 0, %s155
      %s172 = sphi 0, %s156
      %s178 = sphi 0, %s180
      %s181 = sphi 0, %s178
      %s182 = sphi 0, %s181
      %s198 = sphi 0, %s182
      %s204 = sphi 0, %s206
      %s207 = sphi 0, %s204
      %s208 = sphi 0, %s207
      %s224 = sphi 0, %s208
      %s230 = sphi 0, %s232
      %s233 = sphi 0, %s230
      %s234 = sphi 0, %s233
      %s250 = sphi 0, %s234
      %s256 = sphi 0, %s258
      %s259 = sphi 0, %s256
      %s260 = sphi 0, %s259
      %s276 = sphi 0, %s260
      %s282 = sphi 0, %s284
      %s285 = sphi 0, %s282
      %s286 = sphi 0, %s285
      %s302 = sphi 0, %s286
      %s308 = sphi 0, %s310
      %s311 = sphi 0, %s308
      %s312 = sphi 0, %s311
      %s328 = sphi 0, %s312
      %s334 = sphi 0, %s336
      %s337 = sphi 0, %s334
      %s338 = sphi 0, %s337
      %s354 = sphi 0, %s338
      %s360 = sphi 0, %s362
      %s363 = sphi 0, %s360
      %s364 = sphi 0, %s363
      %s380 = sphi 0, %s364
      %s386 = sphi 0, %s388
      %s389 = sphi 0, %s386
      %s390 = sphi 0, %s389
      %s406 = sphi 0, %s390
      %s412 = sphi 0, %s414
      %s415 = sphi 0, %s412
      %s416 = sphi 0, %s415
      %s432 = sphi 0, %s416
      %s436 = sphi 0, %s436
      %s438 = sphi 0, %s436
      %s439 = sphi 0, %s438
      %s453 = sphi 0, %s439
      %s457 = sphi 0, %s457
      %s459 = sphi 0, %s457
      %s460 = sphi 0, %s459
      %s474 = sphi 0, %s460
      %s478 = sphi 0, %s478
      %s480 = sphi 0, %s478
      %s481 = sphi 0, %s480
      %s495 = sphi 0, %s481
      %s499 = sphi 0, %s499
      %s501 = sphi 0, %s499
      %s502 = sphi 0, %s501
      %s516 = sphi 0, %s502
      %s520 = sphi 0, %s520
      %s522 = sphi 0, %s520
      %s523 = sphi 0, %s522
      %s537 = sphi 0, %s523
    $region4: #{fctr_text_encoder_forward.1} parent=1 // loop_header_branch
      %35 = sbr.rel (%p33) target = $region8
    $region5: #{fctr_text_encoder_forward.1} parent=1 // loop_body
      %s37 = ssub.s32 %s32, 1
      %s38 = ssub.s32 %s32, 2
      %s39 = sadd.s32 %s32, 1
      %s41 = sadd.s32 %s40, 1
      %p44 = scmp.eq.s32.totalorder %s32, 1
      %p45 = scmp.ne.s32.totalorder %s40, %s42
      %p46 = scmp.eq.s32.totalorder %s32, 0
      %p47 = por %p45, %p46
      %p48 = scmp.ne.s32.totalorder %s40, %s42
      %p49 = scmp.eq.s32.totalorder %s37, 1
      %p50 = por %p48, %p49
      %p51 = scmp.ne.s32.totalorder %s42, %s43
      %p52 = scmp.eq.s32.totalorder %s37, 0
      %p53 = por %p51, %p52
      %p54 = scmp.ne.s32.totalorder %s42, %s43
      %p55 = scmp.eq.s32.totalorder %s38, 1
      %p56 = por %p54, %p55
      %p58 = scmp.ne.s32.totalorder %s43, %s57
      %p59 = scmp.eq.s32.totalorder %s38, 0
      %p60 = por %p58, %p59
      %s62 = sadd.s32 %s61, 1
      %p65 = scmp.eq.s32.totalorder %s32, 1
      %p66 = scmp.ne.s32.totalorder %s61, %s63
      %p67 = scmp.eq.s32.totalorder %s32, 0
      %p68 = por %p66, %p67
      %p69 = scmp.ne.s32.totalorder %s61, %s63
      %p70 = scmp.eq.s32.totalorder %s37, 1
      %p71 = por %p69, %p70
      %p72 = scmp.ne.s32.totalorder %s63, %s64
      %p73 = scmp.eq.s32.totalorder %s37, 0
      %p74 = por %p72, %p73
      %p75 = scmp.ne.s32.totalorder %s63, %s64
      %p76 = scmp.eq.s32.totalorder %s38, 1
      %p77 = por %p75, %p76
      %p79 = scmp.ne.s32.totalorder %s64, %s78
      %p80 = scmp.eq.s32.totalorder %s38, 0
      %p81 = por %p79, %p80
      %s83 = sadd.s32 %s82, 1
      %p86 = scmp.eq.s32.totalorder %s32, 1
      %p87 = scmp.ne.s32.totalorder %s82, %s84
      %p88 = scmp.eq.s32.totalorder %s32, 0
      %p89 = por %p87, %p88
      %p90 = scmp.ne.s32.totalorder %s82, %s84
      %p91 = scmp.eq.s32.totalorder %s37, 1
      %p92 = por %p90, %p91
      %p93 = scmp.ne.s32.totalorder %s84, %s85
      %p94 = scmp.eq.s32.totalorder %s37, 0
      %p95 = por %p93, %p94
      %p96 = scmp.ne.s32.totalorder %s84, %s85
      %p97 = scmp.eq.s32.totalorder %s38, 1
      %p98 = por %p96, %p97
      %p100 = scmp.ne.s32.totalorder %s85, %s99
      %p101 = scmp.eq.s32.totalorder %s38, 0
      %p102 = por %p100, %p101
      %s104 = sadd.s32 %s103, 1
      %p107 = scmp.eq.s32.totalorder %s32, 1
      %p108 = scmp.ne.s32.totalorder %s103, %s105
      %p109 = scmp.eq.s32.totalorder %s32, 0
      %p110 = por %p108, %p109
      %p111 = scmp.ne.s32.totalorder %s103, %s105
      %p112 = scmp.eq.s32.totalorder %s37, 1
      %p113 = por %p111, %p112
      %p114 = scmp.ne.s32.totalorder %s105, %s106
      %p115 = scmp.eq.s32.totalorder %s37, 0
      %p116 = por %p114, %p115
      %p117 = scmp.ne.s32.totalorder %s105, %s106
      %p118 = scmp.eq.s32.totalorder %s38, 1
      %p119 = por %p117, %p118
      %p121 = scmp.ne.s32.totalorder %s106, %s120
      %p122 = scmp.eq.s32.totalorder %s38, 0
      %p123 = por %p121, %p122
      %s124 = ssub.s32 %s32, %s39
      %p125 = scmp.eq.s32.totalorder %s124, 0
      %s127 = sadd.s32 %s126, 1
      %s128 = scalar_select %p125, %s126, %s127
      %p131 = pneg %p125
      %p132 = scmp.eq.s32.totalorder %s32, 1
      %p133 = por %p131, %p132
      %p134 = scmp.ne.s32.totalorder %s126, %s129
      %p135 = scmp.eq.s32.totalorder %s32, 0
      %p136 = por %p134, %p135
      %p137 = scmp.ne.s32.totalorder %s126, %s129
      %p138 = scmp.eq.s32.totalorder %s37, 1
      %p139 = por %p137, %p138
      %p140 = scmp.ne.s32.totalorder %s129, %s130
      %p141 = scmp.eq.s32.totalorder %s37, 0
      %p142 = por %p140, %p141
      %p143 = scmp.ne.s32.totalorder %s129, %s130
      %p144 = scmp.eq.s32.totalorder %s38, 1
      %p145 = por %p143, %p144
      %p147 = scmp.ne.s32.totalorder %s130, %s146
      %p148 = scmp.eq.s32.totalorder %s38, 0
      %p149 = por %p147, %p148
      %s150 = ssub.s32 %s32, %s39
      %p151 = scmp.eq.s32.totalorder %s150, 0
      %s153 = sadd.s32 %s152, 1
      %s154 = scalar_select %p151, %s152, %s153
      %p157 = pneg %p151
      %p158 = scmp.eq.s32.totalorder %s32, 1
      %p159 = por %p157, %p158
      %p160 = scmp.ne.s32.totalorder %s152, %s155
      %p161 = scmp.eq.s32.totalorder %s32, 0
      %p162 = por %p160, %p161
      %p163 = scmp.ne.s32.totalorder %s152, %s155
      %p164 = scmp.eq.s32.totalorder %s37, 1
      %p165 = por %p163, %p164
      %p166 = scmp.ne.s32.totalorder %s155, %s156
      %p167 = scmp.eq.s32.totalorder %s37, 0
      %p168 = por %p166, %p167
      %p169 = scmp.ne.s32.totalorder %s155, %s156
      %p170 = scmp.eq.s32.totalorder %s38, 1
      %p171 = por %p169, %p170
      %p173 = scmp.ne.s32.totalorder %s156, %s172
      %p174 = scmp.eq.s32.totalorder %s38, 0
      %p175 = por %p173, %p174
      %s176 = ssub.s32 %s32, %s39
      %p177 = scmp.eq.s32.totalorder %s176, 0
      %s179 = sadd.s32 %s178, 1
      %s180 = scalar_select %p177, %s178, %s179
      %p183 = pneg %p177
      %p184 = scmp.eq.s32.totalorder %s32, 1
      %p185 = por %p183, %p184
      %p186 = scmp.ne.s32.totalorder %s178, %s181
      %p187 = scmp.eq.s32.totalorder %s32, 0
      %p188 = por %p186, %p187
      %p189 = scmp.ne.s32.totalorder %s178, %s181
      %p190 = scmp.eq.s32.totalorder %s37, 1
      %p191 = por %p189, %p190
      %p192 = scmp.ne.s32.totalorder %s181, %s182
      %p193 = scmp.eq.s32.totalorder %s37, 0
      %p194 = por %p192, %p193
      %p195 = scmp.ne.s32.totalorder %s181, %s182
      %p196 = scmp.eq.s32.totalorder %s38, 1
      %p197 = por %p195, %p196
      %p199 = scmp.ne.s32.totalorder %s182, %s198
      %p200 = scmp.eq.s32.totalorder %s38, 0
      %p201 = por %p199, %p200
      %s202 = ssub.s32 %s32, %s39
      %p203 = scmp.eq.s32.totalorder %s202, 0
      %s205 = sadd.s32 %s204, 1
      %s206 = scalar_select %p203, %s204, %s205
      %p209 = pneg %p203
      %p210 = scmp.eq.s32.totalorder %s32, 1
      %p211 = por %p209, %p210
      %p212 = scmp.ne.s32.totalorder %s204, %s207
      %p213 = scmp.eq.s32.totalorder %s32, 0
      %p214 = por %p212, %p213
      %p215 = scmp.ne.s32.totalorder %s204, %s207
      %p216 = scmp.eq.s32.totalorder %s37, 1
      %p217 = por %p215, %p216
      %p218 = scmp.ne.s32.totalorder %s207, %s208
      %p219 = scmp.eq.s32.totalorder %s37, 0
      %p220 = por %p218, %p219
      %p221 = scmp.ne.s32.totalorder %s207, %s208
      %p222 = scmp.eq.s32.totalorder %s38, 1
      %p223 = por %p221, %p222
      %p225 = scmp.ne.s32.totalorder %s208, %s224
      %p226 = scmp.eq.s32.totalorder %s38, 0
      %p227 = por %p225, %p226
      %s228 = ssub.s32 %s32, %s39
      %p229 = scmp.eq.s32.totalorder %s228, 0
      %s231 = sadd.s32 %s230, 1
      %s232 = scalar_select %p229, %s230, %s231
      %p235 = pneg %p229
      %p236 = scmp.eq.s32.totalorder %s32, 1
      %p237 = por %p235, %p236
      %p238 = scmp.ne.s32.totalorder %s230, %s233
      %p239 = scmp.eq.s32.totalorder %s32, 0
      %p240 = por %p238, %p239
      %p241 = scmp.ne.s32.totalorder %s230, %s233
      %p242 = scmp.eq.s32.totalorder %s37, 1
      %p243 = por %p241, %p242
      %p244 = scmp.ne.s32.totalorder %s233, %s234
      %p245 = scmp.eq.s32.totalorder %s37, 0
      %p246 = por %p244, %p245
      %p247 = scmp.ne.s32.totalorder %s233, %s234
      %p248 = scmp.eq.s32.totalorder %s38, 1
      %p249 = por %p247, %p248
      %p251 = scmp.ne.s32.totalorder %s234, %s250
      %p252 = scmp.eq.s32.totalorder %s38, 0
      %p253 = por %p251, %p252
      %s254 = ssub.s32 %s32, %s39
      %p255 = scmp.eq.s32.totalorder %s254, 0
      %s257 = sadd.s32 %s256, 1
      %s258 = scalar_select %p255, %s256, %s257
      %p261 = pneg %p255
      %p262 = scmp.eq.s32.totalorder %s32, 1
      %p263 = por %p261, %p262
      %p264 = scmp.ne.s32.totalorder %s256, %s259
      %p265 = scmp.eq.s32.totalorder %s32, 0
      %p266 = por %p264, %p265
      %p267 = scmp.ne.s32.totalorder %s256, %s259
      %p268 = scmp.eq.s32.totalorder %s37, 1
      %p269 = por %p267, %p268
      %p270 = scmp.ne.s32.totalorder %s259, %s260
      %p271 = scmp.eq.s32.totalorder %s37, 0
      %p272 = por %p270, %p271
      %p273 = scmp.ne.s32.totalorder %s259, %s260
      %p274 = scmp.eq.s32.totalorder %s38, 1
      %p275 = por %p273, %p274
      %p277 = scmp.ne.s32.totalorder %s260, %s276
      %p278 = scmp.eq.s32.totalorder %s38, 0
      %p279 = por %p277, %p278
      %s280 = ssub.s32 %s32, %s39
      %p281 = scmp.eq.s32.totalorder %s280, 0
      %s283 = sadd.s32 %s282, 1
      %s284 = scalar_select %p281, %s282, %s283
      %p287 = pneg %p281
      %p288 = scmp.eq.s32.totalorder %s32, 1
      %p289 = por %p287, %p288
      %p290 = scmp.ne.s32.totalorder %s282, %s285
      %p291 = scmp.eq.s32.totalorder %s32, 0
      %p292 = por %p290, %p291
      %p293 = scmp.ne.s32.totalorder %s282, %s285
      %p294 = scmp.eq.s32.totalorder %s37, 1
      %p295 = por %p293, %p294
      %p296 = scmp.ne.s32.totalorder %s285, %s286
      %p297 = scmp.eq.s32.totalorder %s37, 0
      %p298 = por %p296, %p297
      %p299 = scmp.ne.s32.totalorder %s285, %s286
      %p300 = scmp.eq.s32.totalorder %s38, 1
      %p301 = por %p299, %p300
      %p303 = scmp.ne.s32.totalorder %s286, %s302
      %p304 = scmp.eq.s32.totalorder %s38, 0
      %p305 = por %p303, %p304
      %s306 = ssub.s32 %s32, %s39
      %p307 = scmp.eq.s32.totalorder %s306, 0
      %s309 = sadd.s32 %s308, 1
      %s310 = scalar_select %p307, %s308, %s309
      %p313 = pneg %p307
      %p314 = scmp.eq.s32.totalorder %s32, 1
      %p315 = por %p313, %p314
      %p316 = scmp.ne.s32.totalorder %s308, %s311
      %p317 = scmp.eq.s32.totalorder %s32, 0
      %p318 = por %p316, %p317
      %p319 = scmp.ne.s32.totalorder %s308, %s311
      %p320 = scmp.eq.s32.totalorder %s37, 1
      %p321 = por %p319, %p320
      %p322 = scmp.ne.s32.totalorder %s311, %s312
      %p323 = scmp.eq.s32.totalorder %s37, 0
      %p324 = por %p322, %p323
      %p325 = scmp.ne.s32.totalorder %s311, %s312
      %p326 = scmp.eq.s32.totalorder %s38, 1
      %p327 = por %p325, %p326
      %p329 = scmp.ne.s32.totalorder %s312, %s328
      %p330 = scmp.eq.s32.totalorder %s38, 0
      %p331 = por %p329, %p330
      %s332 = ssub.s32 %s32, %s39
      %p333 = scmp.eq.s32.totalorder %s332, 0
      %s335 = sadd.s32 %s334, 1
      %s336 = scalar_select %p333, %s334, %s335
      %p339 = pneg %p333
      %p340 = scmp.eq.s32.totalorder %s32, 1
      %p341 = por %p339, %p340
      %p342 = scmp.ne.s32.totalorder %s334, %s337
      %p343 = scmp.eq.s32.totalorder %s32, 0
      %p344 = por %p342, %p343
      %p345 = scmp.ne.s32.totalorder %s334, %s337
      %p346 = scmp.eq.s32.totalorder %s37, 1
      %p347 = por %p345, %p346
      %p348 = scmp.ne.s32.totalorder %s337, %s338
      %p349 = scmp.eq.s32.totalorder %s37, 0
      %p350 = por %p348, %p349
      %p351 = scmp.ne.s32.totalorder %s337, %s338
      %p352 = scmp.eq.s32.totalorder %s38, 1
      %p353 = por %p351, %p352
      %p355 = scmp.ne.s32.totalorder %s338, %s354
      %p356 = scmp.eq.s32.totalorder %s38, 0
      %p357 = por %p355, %p356
      %s358 = ssub.s32 %s32, %s39
      %p359 = scmp.eq.s32.totalorder %s358, 0
      %s361 = sadd.s32 %s360, 1
      %s362 = scalar_select %p359, %s360, %s361
      %p365 = pneg %p359
      %p366 = scmp.eq.s32.totalorder %s32, 1
      %p367 = por %p365, %p366
      %p368 = scmp.ne.s32.totalorder %s360, %s363
      %p369 = scmp.eq.s32.totalorder %s32, 0
      %p370 = por %p368, %p369
      %p371 = scmp.ne.s32.totalorder %s360, %s363
      %p372 = scmp.eq.s32.totalorder %s37, 1
      %p373 = por %p371, %p372
      %p374 = scmp.ne.s32.totalorder %s363, %s364
      %p375 = scmp.eq.s32.totalorder %s37, 0
      %p376 = por %p374, %p375
      %p377 = scmp.ne.s32.totalorder %s363, %s364
      %p378 = scmp.eq.s32.totalorder %s38, 1
      %p379 = por %p377, %p378
      %p381 = scmp.ne.s32.totalorder %s364, %s380
      %p382 = scmp.eq.s32.totalorder %s38, 0
      %p383 = por %p381, %p382
      %s384 = ssub.s32 %s32, %s39
      %p385 = scmp.eq.s32.totalorder %s384, 0
      %s387 = sadd.s32 %s386, 1
      %s388 = scalar_select %p385, %s386, %s387
      %p391 = pneg %p385
      %p392 = scmp.eq.s32.totalorder %s32, 1
      %p393 = por %p391, %p392
      %p394 = scmp.ne.s32.totalorder %s386, %s389
      %p395 = scmp.eq.s32.totalorder %s32, 0
      %p396 = por %p394, %p395
      %p397 = scmp.ne.s32.totalorder %s386, %s389
      %p398 = scmp.eq.s32.totalorder %s37, 1
      %p399 = por %p397, %p398
      %p400 = scmp.ne.s32.totalorder %s389, %s390
      %p401 = scmp.eq.s32.totalorder %s37, 0
      %p402 = por %p400, %p401
      %p403 = scmp.ne.s32.totalorder %s389, %s390
      %p404 = scmp.eq.s32.totalorder %s38, 1
      %p405 = por %p403, %p404
      %p407 = scmp.ne.s32.totalorder %s390, %s406
      %p408 = scmp.eq.s32.totalorder %s38, 0
      %p409 = por %p407, %p408
      %s410 = ssub.s32 %s32, %s39
      %p411 = scmp.eq.s32.totalorder %s410, 0
      %s413 = sadd.s32 %s412, 1
      %s414 = scalar_select %p411, %s412, %s413
      %p417 = pneg %p411
      %p418 = scmp.eq.s32.totalorder %s32, 1
      %p419 = por %p417, %p418
      %p420 = scmp.ne.s32.totalorder %s412, %s415
      %p421 = scmp.eq.s32.totalorder %s32, 0
      %p422 = por %p420, %p421
      %p423 = scmp.ne.s32.totalorder %s412, %s415
      %p424 = scmp.eq.s32.totalorder %s37, 1
      %p425 = por %p423, %p424
      %p426 = scmp.ne.s32.totalorder %s415, %s416
      %p427 = scmp.eq.s32.totalorder %s37, 0
      %p428 = por %p426, %p427
      %p429 = scmp.ne.s32.totalorder %s415, %s416
      %p430 = scmp.eq.s32.totalorder %s38, 1
      %p431 = por %p429, %p430
      %p433 = scmp.ne.s32.totalorder %s416, %s432
      %p434 = scmp.eq.s32.totalorder %s38, 0
      %p435 = por %p433, %p434
      %s437 = sadd.s32 %s436, 1
      %p440 = scmp.eq.s32.totalorder %s32, 1
      %p441 = scmp.ne.s32.totalorder %s436, %s438
      %p442 = scmp.eq.s32.totalorder %s32, 0
      %p443 = por %p441, %p442
      %p444 = scmp.ne.s32.totalorder %s436, %s438
      %p445 = scmp.eq.s32.totalorder %s37, 1
      %p446 = por %p444, %p445
      %p447 = scmp.ne.s32.totalorder %s438, %s439
      %p448 = scmp.eq.s32.totalorder %s37, 0
      %p449 = por %p447, %p448
      %p450 = scmp.ne.s32.totalorder %s438, %s439
      %p451 = scmp.eq.s32.totalorder %s38, 1
      %p452 = por %p450, %p451
      %p454 = scmp.ne.s32.totalorder %s439, %s453
      %p455 = scmp.eq.s32.totalorder %s38, 0
      %p456 = por %p454, %p455
      %s458 = sadd.s32 %s457, 1
      %p461 = scmp.eq.s32.totalorder %s32, 1
      %p462 = scmp.ne.s32.totalorder %s457, %s459
      %p463 = scmp.eq.s32.totalorder %s32, 0
      %p464 = por %p462, %p463
      %p465 = scmp.ne.s32.totalorder %s457, %s459
      %p466 = scmp.eq.s32.totalorder %s37, 1
      %p467 = por %p465, %p466
      %p468 = scmp.ne.s32.totalorder %s459, %s460
      %p469 = scmp.eq.s32.totalorder %s37, 0
      %p470 = por %p468, %p469
      %p471 = scmp.ne.s32.totalorder %s459, %s460
      %p472 = scmp.eq.s32.totalorder %s38, 1
      %p473 = por %p471, %p472
      %p475 = scmp.ne.s32.totalorder %s460, %s474
      %p476 = scmp.eq.s32.totalorder %s38, 0
      %p477 = por %p475, %p476
      %s479 = sadd.s32 %s478, 1
      %p482 = scmp.eq.s32.totalorder %s32, 1
      %p483 = scmp.ne.s32.totalorder %s478, %s480
      %p484 = scmp.eq.s32.totalorder %s32, 0
      %p485 = por %p483, %p484
      %p486 = scmp.ne.s32.totalorder %s478, %s480
      %p487 = scmp.eq.s32.totalorder %s37, 1
      %p488 = por %p486, %p487
      %p489 = scmp.ne.s32.totalorder %s480, %s481
      %p490 = scmp.eq.s32.totalorder %s37, 0
      %p491 = por %p489, %p490
      %p492 = scmp.ne.s32.totalorder %s480, %s481
      %p493 = scmp.eq.s32.totalorder %s38, 1
      %p494 = por %p492, %p493
      %p496 = scmp.ne.s32.totalorder %s481, %s495
      %p497 = scmp.eq.s32.totalorder %s38, 0
      %p498 = por %p496, %p497
      %s500 = sadd.s32 %s499, 1
      %p503 = scmp.eq.s32.totalorder %s32, 1
      %p504 = scmp.ne.s32.totalorder %s499, %s501
      %p505 = scmp.eq.s32.totalorder %s32, 0
      %p506 = por %p504, %p505
      %p507 = scmp.ne.s32.totalorder %s499, %s501
      %p508 = scmp.eq.s32.totalorder %s37, 1
      %p509 = por %p507, %p508
      %p510 = scmp.ne.s32.totalorder %s501, %s502
      %p511 = scmp.eq.s32.totalorder %s37, 0
      %p512 = por %p510, %p511
      %p513 = scmp.ne.s32.totalorder %s501, %s502
      %p514 = scmp.eq.s32.totalorder %s38, 1
      %p515 = por %p513, %p514
      %p517 = scmp.ne.s32.totalorder %s502, %s516
      %p518 = scmp.eq.s32.totalorder %s38, 0
      %p519 = por %p517, %p518
      %s521 = sadd.s32 %s520, 1
      %p524 = scmp.eq.s32.totalorder %s32, 1
      %p525 = scmp.ne.s32.totalorder %s520, %s522
      %p526 = scmp.eq.s32.totalorder %s32, 0
      %p527 = por %p525, %p526
      %p528 = scmp.ne.s32.totalorder %s520, %s522
      %p529 = scmp.eq.s32.totalorder %s37, 1
      %p530 = por %p528, %p529
      %p531 = scmp.ne.s32.totalorder %s522, %s523
      %p532 = scmp.eq.s32.totalorder %s37, 0
      %p533 = por %p531, %p532
      %p534 = scmp.ne.s32.totalorder %s522, %s523
      %p535 = scmp.eq.s32.totalorder %s38, 1
      %p536 = por %p534, %p535
      %p538 = scmp.ne.s32.totalorder %s523, %s537
      %p539 = scmp.eq.s32.totalorder %s38, 0
      %p540 = por %p538, %p539
      %p541 = scmp.le.s32.totalorder 1, %s32
      %p542 = scmp.lt.s32.totalorder %s32, 3
      %p543 = pnand %p541, %p542
      %p544 = pneg %p543
      // Predicated region
      $region9: #{fctr_text_encoder_forward.1} parent=5 // pred_check
        _
      $region10: #{fctr_text_encoder_forward.1} parent=5 // pred_check_branch
        %546 = sbr.rel (%p543) target = $region12
      $region11: #{fctr_text_encoder_forward.1} parent=5 // pred_region
        %s547 = ssub.s32 %s32, 1
        // Predicated region
        $region13: #{fctr_text_encoder_forward.1} parent=11 // pred_check
          %p548 = pneg %p53
        $region14: #{fctr_text_encoder_forward.1} parent=11 // pred_check_branch
          %550 = sbr.rel (%p548) target = $region16
        $region15: #{fctr_text_encoder_forward.1} parent=11 // pred_region
          _
        $region16: #{fctr_text_encoder_forward.1} parent=11 // pred_fallthru
          _
        // Predicated region
        $region17: #{fctr_text_encoder_forward.1} parent=11 // pred_check
          %p551 = pneg %p74
        $region18: #{fctr_text_encoder_forward.1} parent=11 // pred_check_branch
          %553 = sbr.rel (%p551) target = $region20
        $region19: #{fctr_text_encoder_forward.1} parent=11 // pred_region
          _
        $region20: #{fctr_text_encoder_forward.1} parent=11 // pred_fallthru
          _
        // Predicated region
        $region21: #{fctr_text_encoder_forward.1} parent=11 // pred_check
          %p554 = pneg %p95
        $region22: #{fctr_text_encoder_forward.1} parent=11 // pred_check_branch
          %556 = sbr.rel (%p554) target = $region24
        $region23: #{fctr_text_encoder_forward.1} parent=11 // pred_region
          _
        $region24: #{fctr_text_encoder_forward.1} parent=11 // pred_fallthru
          _
        // Predicated region
        $region25: #{fctr_text_encoder_forward.1} parent=11 // pred_check
          %p557 = pneg %p116
        $region26: #{fctr_text_encoder_forward.1} parent=11 // pred_check_branch
          %559 = sbr.rel (%p557) target = $region28
        $region27: #{fctr_text_encoder_forward.1} parent=11 // pred_region
          _
        $region28: #{fctr_text_encoder_forward.1} parent=11 // pred_fallthru
          _
        // Predicated region
        $region29: #{fctr_text_encoder_forward.1} parent=11 // pred_check
          %p560 = pneg %p449
        $region30: #{fctr_text_encoder_forward.1} parent=11 // pred_check_branch
          %562 = sbr.rel (%p560) target = $region32
        $region31: #{fctr_text_encoder_forward.1} parent=11 // pred_region
          _
        $region32: #{fctr_text_encoder_forward.1} parent=11 // pred_fallthru
          _
        // Predicated region
        $region33: #{fctr_text_encoder_forward.1} parent=11 // pred_check
          %p563 = pneg %p470
        $region34: #{fctr_text_encoder_forward.1} parent=11 // pred_check_branch
          %565 = sbr.rel (%p563) target = $region36
        $region35: #{fctr_text_encoder_forward.1} parent=11 // pred_region
          _
        $region36: #{fctr_text_encoder_forward.1} parent=11 // pred_fallthru
          _
        // Predicated region
        $region37: #{fctr_text_encoder_forward.1} parent=11 // pred_check
          %p566 = pneg %p491
        $region38: #{fctr_text_encoder_forward.1} parent=11 // pred_check_branch
          %568 = sbr.rel (%p566) target = $region40
        $region39: #{fctr_text_encoder_forward.1} parent=11 // pred_region
          _
        $region40: #{fctr_text_encoder_forward.1} parent=11 // pred_fallthru
          _
        // Predicated region
        $region41: #{fctr_text_encoder_forward.1} parent=11 // pred_check
          %p569 = pneg %p512
        $region42: #{fctr_text_encoder_forward.1} parent=11 // pred_check_branch
          %571 = sbr.rel (%p569) target = $region44
        $region43: #{fctr_text_encoder_forward.1} parent=11 // pred_region
          _
        $region44: #{fctr_text_encoder_forward.1} parent=11 // pred_fallthru
          _
      $region12: #{fctr_text_encoder_forward.1} parent=5 // pred_fallthru
        _
      %p572 = scmp.lt.s32.totalorder %s32, 2
      // Predicated region
      $region45: #{fctr_text_encoder_forward.1} parent=5 // pred_check
        %p573 = pneg %p572
      $region46: #{fctr_text_encoder_forward.1} parent=5 // pred_check_branch
        %575 = sbr.rel (%p573) target = $region48
      $region47: #{fctr_text_encoder_forward.1} parent=5 // pred_region
        // Predicated region
        $region49: #{fctr_text_encoder_forward.1} parent=47 // pred_check
          %p576 = pneg %p136
        $region50: #{fctr_text_encoder_forward.1} parent=47 // pred_check_branch
          %578 = sbr.rel (%p576) target = $region52
        $region51: #{fctr_text_encoder_forward.1} parent=47 // pred_region
          %p579 = scmp.lt.s32.totalorder %s32, 1
          %s580 = scalar_select %p579, %s32, 1
          %s581 = smul.addr %s580, 4
          %s582 = smul.addr %s581, 8
          %s583 = scalar_lea.vmem %s4, %s582
        $region52: #{fctr_text_encoder_forward.1} parent=47 // pred_fallthru
          _
        // Predicated region
        $region53: #{fctr_text_encoder_forward.1} parent=47 // pred_check
          %p584 = pneg %p162
        $region54: #{fctr_text_encoder_forward.1} parent=47 // pred_check_branch
          %586 = sbr.rel (%p584) target = $region56
        $region55: #{fctr_text_encoder_forward.1} parent=47 // pred_region
          %p587 = scmp.lt.s32.totalorder %s32, 1
          %s588 = scalar_select %p587, %s32, 1
          %s589 = scalar_lea.vmem %s5, %s588
        $region56: #{fctr_text_encoder_forward.1} parent=47 // pred_fallthru
          _
        // Predicated region
        $region57: #{fctr_text_encoder_forward.1} parent=47 // pred_check
          %p590 = pneg %p188
        $region58: #{fctr_text_encoder_forward.1} parent=47 // pred_check_branch
          %592 = sbr.rel (%p590) target = $region60
        $region59: #{fctr_text_encoder_forward.1} parent=47 // pred_region
          %s593 = sand.u32 %s178, 1
          %s594 = scalar_lea.sflag [#allocation4], %s593
          %s595 = sand.u32 %s178, 1
          %s596 = smul.addr %s595, 32
          %s597 = scalar_lea.vmem [#allocation3], %s596
          %s599 = ssub.s32 512, 512
          %600 = vsyncadd %s594, %s599
          %s601 = smul.addr %s32, 4
          %s602 = smul.addr %s601, 128
          %s603 = scalar_lea.hbm %s6, %s602
          %s604 = sshll.u32 %s597, 4
          %s605 = int_to_ptr.vmem [resolvable:$true] %s604
          %610 = dma.hbm_to_vmem [thread:$0]  %s603, 512, %s605, %s594, 128, 128, 8
        $region60: #{fctr_text_encoder_forward.1} parent=47 // pred_fallthru
          _
        // Predicated region
        $region61: #{fctr_text_encoder_forward.1} parent=47 // pred_check
          %p611 = pneg %p214
        $region62: #{fctr_text_encoder_forward.1} parent=47 // pred_check_branch
          %613 = sbr.rel (%p611) target = $region64
        $region63: #{fctr_text_encoder_forward.1} parent=47 // pred_region
          %p614 = scmp.lt.s32.totalorder %s32, 1
          %s615 = scalar_select %p614, %s32, 1
          %s616 = scalar_lea.vmem %s7, %s615
        $region64: #{fctr_text_encoder_forward.1} parent=47 // pred_fallthru
          _
        // Predicated region
        $region65: #{fctr_text_encoder_forward.1} parent=47 // pred_check
          %p617 = pneg %p240
        $region66: #{fctr_text_encoder_forward.1} parent=47 // pred_check_branch
          %619 = sbr.rel (%p617) target = $region68
        $region67: #{fctr_text_encoder_forward.1} parent=47 // pred_region
          %p620 = scmp.lt.s32.totalorder %s32, 1
          %s621 = scalar_select %p620, %s32, 1
          %s622 = scalar_lea.vmem %s8, %s621
        $region68: #{fctr_text_encoder_forward.1} parent=47 // pred_fallthru
          _
        // Predicated region
        $region69: #{fctr_text_encoder_forward.1} parent=47 // pred_check
          %p623 = pneg %p266
        $region70: #{fctr_text_encoder_forward.1} parent=47 // pred_check_branch
          %625 = sbr.rel (%p623) target = $region72
        $region71: #{fctr_text_encoder_forward.1} parent=47 // pred_region
          %p626 = scmp.lt.s32.totalorder %s32, 1
          %s627 = scalar_select %p626, %s32, 1
          %s628 = scalar_lea.vmem %s9, %s627
        $region72: #{fctr_text_encoder_forward.1} parent=47 // pred_fallthru
          _
        // Predicated region
        $region73: #{fctr_text_encoder_forward.1} parent=47 // pred_check
          %p629 = pneg %p292
        $region74: #{fctr_text_encoder_forward.1} parent=47 // pred_check_branch
          %631 = sbr.rel (%p629) target = $region76
        $region75: #{fctr_text_encoder_forward.1} parent=47 // pred_region
          %s632 = sand.u32 %s282, 1
          %s633 = scalar_lea.sflag [#allocation6], %s632
          %s634 = sand.u32 %s282, 1
          %s635 = smul.addr %s634, 32
          %s636 = scalar_lea.vmem [#allocation5], %s635
          %s638 = ssub.s32 512, 512
          %639 = vsyncadd %s633, %s638
          %s640 = smul.addr %s32, 4
          %s641 = smul.addr %s640, 128
          %s642 = scalar_lea.hbm %s10, %s641
          %s643 = sshll.u32 %s636, 4
          %s644 = int_to_ptr.vmem [resolvable:$true] %s643
          %649 = dma.hbm_to_vmem [thread:$0]  %s642, 512, %s644, %s633, 128, 128, 8
        $region76: #{fctr_text_encoder_forward.1} parent=47 // pred_fallthru
          _
        // Predicated region
        $region77: #{fctr_text_encoder_forward.1} parent=47 // pred_check
          %p650 = pneg %p318
        $region78: #{fctr_text_encoder_forward.1} parent=47 // pred_check_branch
          %652 = sbr.rel (%p650) target = $region80
        $region79: #{fctr_text_encoder_forward.1} parent=47 // pred_region
          %p653 = scmp.lt.s32.totalorder %s32, 1
          %s654 = scalar_select %p653, %s32, 1
          %s655 = scalar_lea.vmem %s11, %s654
        $region80: #{fctr_text_encoder_forward.1} parent=47 // pred_fallthru
          _
        // Predicated region
        $region81: #{fctr_text_encoder_forward.1} parent=47 // pred_check
          %p656 = pneg %p344
        $region82: #{fctr_text_encoder_forward.1} parent=47 // pred_check_branch
          %658 = sbr.rel (%p656) target = $region84
        $region83: #{fctr_text_encoder_forward.1} parent=47 // pred_region
          %p659 = scmp.lt.s32.totalorder %s32, 1
          %s660 = scalar_select %p659, %s32, 1
          %s661 = smul.addr %s660, 8
          %s662 = smul.addr %s661, 8
          %s663 = scalar_lea.vmem %s12, %s662
        $region84: #{fctr_text_encoder_forward.1} parent=47 // pred_fallthru
          _
        // Predicated region
        $region85: #{fctr_text_encoder_forward.1} parent=47 // pred_check
          %p664 = pneg %p370
        $region86: #{fctr_text_encoder_forward.1} parent=47 // pred_check_branch
          %666 = sbr.rel (%p664) target = $region88
        $region87: #{fctr_text_encoder_forward.1} parent=47 // pred_region
          %p667 = scmp.lt.s32.totalorder %s32, 1
          %s668 = scalar_select %p667, %s32, 1
          %s669 = scalar_lea.vmem %s13, %s668
        $region88: #{fctr_text_encoder_forward.1} parent=47 // pred_fallthru
          _
        // Predicated region
        $region89: #{fctr_text_encoder_forward.1} parent=47 // pred_check
          %p670 = pneg %p396
        $region90: #{fctr_text_encoder_forward.1} parent=47 // pred_check_branch
          %672 = sbr.rel (%p670) target = $region92
        $region91: #{fctr_text_encoder_forward.1} parent=47 // pred_region
          %p673 = scmp.lt.s32.totalorder %s32, 1
          %s674 = scalar_select %p673, %s32, 1
          %s675 = scalar_lea.vmem %s14, %s674
        $region92: #{fctr_text_encoder_forward.1} parent=47 // pred_fallthru
          _
        // Predicated region
        $region93: #{fctr_text_encoder_forward.1} parent=47 // pred_check
          %p676 = pneg %p422
        $region94: #{fctr_text_encoder_forward.1} parent=47 // pred_check_branch
          %678 = sbr.rel (%p676) target = $region96
        $region95: #{fctr_text_encoder_forward.1} parent=47 // pred_region
          %p679 = scmp.lt.s32.totalorder %s32, 1
          %s680 = scalar_select %p679, %s32, 1
          %s681 = scalar_lea.vmem %s15, %s680
        $region96: #{fctr_text_encoder_forward.1} parent=47 // pred_fallthru
          _
      $region48: #{fctr_text_encoder_forward.1} parent=5 // pred_fallthru
        _
      %p682 = scmp.le.s32.totalorder 1, %s32
      %p683 = scmp.lt.s32.totalorder %s32, 3
      %p684 = pnand %p682, %p683
      %p685 = pneg %p684
      // Predicated region
      $region97: #{fctr_text_encoder_forward.1} parent=5 // pred_check
        _
      $region98: #{fctr_text_encoder_forward.1} parent=5 // pred_check_branch
        %687 = sbr.rel (%p684) target = $region100
      $region99: #{fctr_text_encoder_forward.1} parent=5 // pred_region
        %s688 = ssub.s32 %s32, 1
        %s689 = sand.u32 %s181, 1
        %s690 = scalar_lea.sflag [#allocation4], %s689
        %s691 = sand.u32 %s181, 1
        %s692 = smul.addr %s691, 32
        %s693 = scalar_lea.vmem [#allocation3], %s692
        // Predicated region
        $region101: #{fctr_text_encoder_forward.1} parent=99 // pred_check
          %p694 = pneg %p194
        $region102: #{fctr_text_encoder_forward.1} parent=99 // pred_check_branch
          %696 = sbr.rel (%p694) target = $region104
        $region103: #{fctr_text_encoder_forward.1} parent=99 // pred_region
          %697 = dma.done %s690, 512
        $region104: #{fctr_text_encoder_forward.1} parent=99 // pred_fallthru
          _
        %s698 = sand.u32 %s285, 1
        %s699 = scalar_lea.sflag [#allocation6], %s698
        %s700 = sand.u32 %s285, 1
        %s701 = smul.addr %s700, 32
        %s702 = scalar_lea.vmem [#allocation5], %s701
        // Predicated region
        $region105: #{fctr_text_encoder_forward.1} parent=99 // pred_check
          %p703 = pneg %p298
        $region106: #{fctr_text_encoder_forward.1} parent=99 // pred_check_branch
          %705 = sbr.rel (%p703) target = $region108
        $region107: #{fctr_text_encoder_forward.1} parent=99 // pred_region
          %706 = dma.done %s699, 512
        $region108: #{fctr_text_encoder_forward.1} parent=99 // pred_fallthru
          _
        %p707 = pneg %p53
        %p708 = pneg %p50
        %p709 = pneg %p74
        %p710 = pneg %p71
        %p711 = pneg %p95
        %p712 = pneg %p92
        %p713 = pneg %p116
        %p714 = pneg %p113
        %p715 = scmp.lt.s32.totalorder %s37, 1
        %s716 = scalar_select %p715, %s37, 1
        %s717 = smul.addr %s716, 4
        %s718 = smul.addr %s717, 8
        %s719 = scalar_lea.vmem %s4, %s718
        %p720 = pneg %p142
        %p721 = pneg %p139
        %p722 = scmp.lt.s32.totalorder %s37, 1
        %s723 = scalar_select %p722, %s37, 1
        %s724 = scalar_lea.vmem %s5, %s723
        %p725 = pneg %p168
        %p726 = pneg %p165
        %s727 = sand.u32 %s181, 1
        %s728 = scalar_lea.sflag [#allocation4], %s727
        %s729 = sand.u32 %s181, 1
        %s730 = smul.addr %s729, 32
        %s731 = scalar_lea.vmem [#allocation3], %s730
        %p732 = pneg %p194
        %p733 = pneg %p191
        %p734 = scmp.lt.s32.totalorder %s37, 1
        %s735 = scalar_select %p734, %s37, 1
        %s736 = scalar_lea.vmem %s7, %s735
        %p737 = pneg %p220
        %p738 = pneg %p217
        %p739 = scmp.lt.s32.totalorder %s37, 1
        %s740 = scalar_select %p739, %s37, 1
        %s741 = scalar_lea.vmem %s8, %s740
        %p742 = pneg %p246
        %p743 = pneg %p243
        %p744 = scmp.lt.s32.totalorder %s37, 1
        %s745 = scalar_select %p744, %s37, 1
        %s746 = scalar_lea.vmem %s9, %s745
        %p747 = pneg %p272
        %p748 = pneg %p269
        %s749 = sand.u32 %s285, 1
        %s750 = scalar_lea.sflag [#allocation6], %s749
        %s751 = sand.u32 %s285, 1
        %s752 = smul.addr %s751, 32
        %s753 = scalar_lea.vmem [#allocation5], %s752
        %p754 = pneg %p298
        %p755 = pneg %p295
        %p756 = scmp.lt.s32.totalorder %s37, 1
        %s757 = scalar_select %p756, %s37, 1
        %s758 = scalar_lea.vmem %s11, %s757
        %p759 = pneg %p324
        %p760 = pneg %p321
        %p761 = scmp.lt.s32.totalorder %s37, 1
        %s762 = scalar_select %p761, %s37, 1
        %s763 = smul.addr %s762, 8
        %s764 = smul.addr %s763, 8
        %s765 = scalar_lea.vmem %s12, %s764
        %p766 = pneg %p350
        %p767 = pneg %p347
        %p768 = scmp.lt.s32.totalorder %s37, 1
        %s769 = scalar_select %p768, %s37, 1
        %s770 = scalar_lea.vmem %s13, %s769
        %p771 = pneg %p376
        %p772 = pneg %p373
        %p773 = scmp.lt.s32.totalorder %s37, 1
        %s774 = scalar_select %p773, %s37, 1
        %s775 = scalar_lea.vmem %s14, %s774
        %p776 = pneg %p402
        %p777 = pneg %p399
        %p778 = scmp.lt.s32.totalorder %s37, 1
        %s779 = scalar_select %p778, %s37, 1
        %s780 = scalar_lea.vmem %s15, %s779
        %p781 = pneg %p428
        %p782 = pneg %p425
        %p783 = pneg %p449
        %p784 = pneg %p446
        %p785 = pneg %p470
        %p786 = pneg %p467
        %p787 = pneg %p491
        %p788 = pneg %p488
        %p789 = pneg %p512
        %p790 = pneg %p509
        %p791 = pneg %p533
        %p792 = pneg %p530
        %p793 = scmp.lt.s32.totalorder %s37, 1
        %s794 = scalar_select %p793, %s37, 1
        %s795 = smul.addr %s794, 4
        %s796 = smul.addr %s795, 8
        %s797 = scalar_lea.vmem %s4, %s796
        %p798 = scmp.lt.s32.totalorder %s37, 1
        %s799 = scalar_select %p798, %s37, 1
        %s800 = scalar_lea.vmem %s5, %s799
        %p801 = scmp.lt.s32.totalorder %s37, 1
        %s802 = scalar_select %p801, %s37, 1
        %s803 = scalar_lea.vmem %s7, %s802
        %p804 = scmp.lt.s32.totalorder %s37, 1
        %s805 = scalar_select %p804, %s37, 1
        %s806 = scalar_lea.vmem %s8, %s805
        %p807 = scmp.lt.s32.totalorder %s37, 1
        %s808 = scalar_select %p807, %s37, 1
        %s809 = scalar_lea.vmem %s9, %s808
        %p810 = scmp.lt.s32.totalorder %s37, 1
        %s811 = scalar_select %p810, %s37, 1
        %s812 = scalar_lea.vmem %s11, %s811
        %p813 = scmp.lt.s32.totalorder %s37, 1
        %s814 = scalar_select %p813, %s37, 1
        %s815 = smul.addr %s814, 8
        %s816 = smul.addr %s815, 8
        %s817 = scalar_lea.vmem %s12, %s816
        %p818 = scmp.lt.s32.totalorder %s37, 1
        %s819 = scalar_select %p818, %s37, 1
        %s820 = scalar_lea.vmem %s13, %s819
        %p821 = scmp.lt.s32.totalorder %s37, 1
        %s822 = scalar_select %p821, %s37, 1
        %s823 = scalar_lea.vmem %s14, %s822
        %p824 = scmp.lt.s32.totalorder %s37, 1
        %s825 = scalar_select %p824, %s37, 1
        %s826 = scalar_lea.vmem %s15, %s825
        %p827 = scmp.eq.s32.totalorder %s37, 0
        // Predicated region
        $region109: #{fctr_text_encoder_forward.1} parent=99 // pred_check
          %p828 = pneg %p827
        $region110: #{fctr_text_encoder_forward.1} parent=99 // pred_check_branch
          %830 = sbr.rel (%p828) target = $region112
        $region111: #{fctr_text_encoder_forward.1} parent=99 // pred_region
          %v831 = vld [vmem:[%s0] sm:$0xff]
          %v832 = vld [vmem:[%s0 + $0x8] sm:$0xff]
          %v833 = vld [vmem:[%s1] sm:$0x1]
          %v834 = vld [vmem:[%s2] sm:$0x1]
          %vm835 = vcmask 261120
          %v836 = vsel %vm835, %v831, 0.0
          %837 = vadd.xlane.f32.xlu0 %v836
          %v838 = vpop.xlane.xlu0 %837
          %v839 = vsel %vm835, %v832, 0.0
          %840 = vadd.xlane.f32.xlu0 %v839
          %v841 = vpop.xlane.xlu0 %840
          %v842 = vrcp.pop 32.0
          %v843 = vmul.f32 %v838, %v842
          %v844 = vmul.f32 %v841, %v842
          %v845 = vsub.f32 %v831, %v843
          %v846 = vsub.f32 %v832, %v844
          %v847 = vmul.f32 %v845, %v845
          %v848 = vmul.f32 %v846, %v846
          %v849 = vsel %vm835, %v847, 0.0
          %850 = vadd.xlane.f32.xlu0 %v849
          %v851 = vpop.xlane.xlu0 %850
          %v852 = vsel %vm835, %v848, 0.0
          %853 = vadd.xlane.f32.xlu0 %v852
          %v854 = vpop.xlane.xlu0 %853
          %v855 = vmul.f32 %v851, %v842
          %v856 = vmul.f32 %v854, %v842
          %v857 = vadd.f32 %v855, 1e-12
          %v858 = vadd.f32 %v856, 1e-12
          %v859 = vrsqrt.pop %v857
          %v860 = vrsqrt.pop %v858
          %v861 = vmul.f32 %v845, %v859
          %v862 = vmul.f32 %v846, %v860
          %v864 = vlaneseq
          %v865 = vshrl.u32 %v864, 7
          %v866 = vsub.s32 0, %v865
          %v867 = vrot.slane %v833, %v866
          %v869 = vmul.f32 %v861, %v867
          %v870 = vmul.f32 %v862, %v867
          %v872 = vlaneseq
          %v873 = vshrl.u32 %v872, 7
          %v874 = vsub.s32 0, %v873
          %v875 = vrot.slane %v834, %v874
          %v877 = vadd.f32 %v869, %v875
          %v878 = vadd.f32 %v870, %v875
          %879 = vst.msk [vmem:[#allocation2] sm:$0xff] %vm835, %v877
          %880 = vst.msk [vmem:[#allocation2 + $0x8] sm:$0xff] %vm835, %v878
        $region112: #{fctr_text_encoder_forward.1} parent=99 // pred_fallthru
          _
        %v881 = vld [vmem:[#allocation2] sm:$0xff]
        %v882 = vld [vmem:[#allocation2 + $0x8] sm:$0xff]
        %v883 = vld [vmem:[%s797] sm:$0xff]
        %v884 = vld [vmem:[%s797 + $0x8] sm:$0xff]
        %v885 = vld [vmem:[%s797 + $0x10] sm:$0xff]
        %v886 = vld [vmem:[%s797 + $0x18] sm:$0xff]
        %v887 = vld [vmem:[%s800] sm:$0x1]
        %v889 = vlaneseq
        %v890 = vshrl.u32 %v889, 7
        %v891 = vsub.s32 0, %v890
        %v892 = vrot.slane %v887, %v891
        %vm894 = vcmask 261120
        %v896 = vsel %vm894, %v881, 0
        %v899 = vsel %vm894, %v882, 0
        %901 = vmatprep.subr.mxu0 0.0
        %902 = vmatpush1.msra.mxu0 0.0
        %903 = vmatprep.subr.mxu0 0.0
        %904 = vmatpush1.msra.mxu0 0.0
        %905 = vmatprep.subr.mxu0 0.0
        %906 = vmatpush1.msra.mxu0 0.0
        %907 = vmatprep.subr.mxu0 0.0
        %908 = vmatpush1.msra.mxu0 0.0
        %909 = vmatprep.subr.mxu0 0.0
        %910 = vmatpush1.msra.mxu0 0.0
        %911 = vmatprep.subr.mxu0 0.0
        %912 = vmatpush1.msra.mxu0 0.0
        %913 = vmatprep.subr.mxu0 0.0
        %914 = vmatpush1.msra.mxu0 0.0
        %915 = vmatprep.subr.mxu0 0.0
        %916 = vmatpush1.msra.mxu0 0.0
        %917 = vmatprep.subr.mxu0 0.0
        %918 = vmatpush1.msra.mxu0 0.0
        %919 = vmatprep.subr.mxu0 0.0
        %920 = vmatpush1.msra.mxu0 0.0
        %921 = vmatprep.subr.mxu0 0.0
        %922 = vmatpush1.msra.mxu0 0.0
        %923 = vmatprep.subr.mxu0 0.0
        %924 = vmatpush1.msra.mxu0 0.0
        %925 = vmatprep.subr.mxu0 0.0
        %926 = vmatpush1.msra.mxu0 %v886
        %927 = vmatprep.subr.mxu0 0.0
        %928 = vmatpush1.msra.mxu0 %v885
        %929 = vmatprep.subr.mxu0 0.0
        %930 = vmatpush1.msra.mxu0 %v884
        %931 = vmatprep.subr.mxu0 0.0
        %932 = vmatpush1.msra.mxu0 %v883
        %933 = vmatprep.subr.mxu0 0.0
        %934 = vmatpush2.msra.mxu0 0.0
        %935 = vmatprep.subr.mxu0 0.0
        %936 = vmatpush2.msra.mxu0 0.0
        %937 = vmatprep.subr.mxu0 0.0
        %938 = vmatpush2.msra.mxu0 0.0
        %939 = vmatprep.subr.mxu0 0.0
        %940 = vmatpush2.msra.mxu0 0.0
        %941 = vmatprep.subr.mxu0 0.0
        %942 = vmatpush2.msra.mxu0 0.0
        %943 = vmatprep.subr.mxu0 0.0
        %944 = vmatpush2.msra.mxu0 0.0
        %945 = vmatprep.subr.mxu0 0.0
        %946 = vmatpush2.msra.mxu0 0.0
        %947 = vmatprep.subr.mxu0 0.0
        %948 = vmatpush2.msra.mxu0 0.0
        %949 = vmatprep.subr.mxu0 0.0
        %950 = vmatpush2.msra.mxu0 0.0
        %951 = vmatprep.subr.mxu0 0.0
        %952 = vmatpush2.msra.mxu0 0.0
        %953 = vmatprep.subr.mxu0 0.0
        %954 = vmatpush2.msra.mxu0 0.0
        %955 = vmatprep.subr.mxu0 0.0
        %956 = vmatpush2.msra.mxu0 0.0
        %957 = vmatprep.subr.mxu0 0.0
        %958 = vmatpush2.msra.mxu0 0.0
        %959 = vmatprep.subr.mxu0 0.0
        %960 = vmatpush2.msra.mxu0 0.0
        %961 = vmatprep.subr.mxu0 0.0
        %962 = vmatpush2.msra.mxu0 0.0
        %963 = vmatprep.subr.mxu0 0.0
        %964 = vmatpush2.msra.mxu0 0.0
        %965 = vmatprep.mubr.f32.mxu0 0.0
        %966 = vmatmul.mubr.f32.gmra.mxu0 %v896
        %v967 = vpop.f32.mrf.mxu0
        %v968 = vadd.f32 %v892, %v967
        %v969 = vpop.f32.mrf.mxu0
        %970 = vmatprep.mubr.f32.mxu0 0.0
        %971 = vmatmul.mubr.f32.gmra.mxu0 %v899
        %v972 = vpop.f32.mrf.mxu0
        %v973 = vadd.f32 %v892, %v972
        %v974 = vpop.f32.mrf.mxu0
        %975 = vdwg.mxu0
        %v976 = vld [vmem:[%s3] sm:$0xff]
        %v977 = vld [vmem:[%s3 + $0x8] sm:$0xff]
        %980 = vrot.lane.b32.xlu0 %v968, 96
        %v981 = vpop.permute.xlu0 %980
        %982 = vrot.lane.b32.xlu0 %v973, 96
        %v983 = vpop.permute.xlu0 %982
        %vm984 = vcmask 64512
        %v985 = vsel %vm984, %v968, 0
        %v987 = vsel %vm984, %v973, 0
        %v989 = vsel %vm984, %v981, 0
        %v991 = vsel %vm984, %v983, 0
        %993 = vmatprep.subr.mxu0 0.0
        %994 = vmatpush1.xpose.msra.mxu0 0.0
        %995 = vmatprep.subr.mxu0 0.0
        %996 = vmatpush1.xpose.msra.mxu0 0.0
        %997 = vmatprep.subr.mxu0 0.0
        %998 = vmatpush1.xpose.msra.mxu0 0.0
        %999 = vmatprep.subr.mxu0 0.0
        %1000 = vmatpush1.xpose.msra.mxu0 0.0
        %1001 = vmatprep.subr.mxu0 0.0
        %1002 = vmatpush1.xpose.msra.mxu0 0.0
        %1003 = vmatprep.subr.mxu0 0.0
        %1004 = vmatpush1.xpose.msra.mxu0 0.0
        %1005 = vmatprep.subr.mxu0 0.0
        %1006 = vmatpush1.xpose.msra.mxu0 0.0
        %1007 = vmatprep.subr.mxu0 0.0
        %1008 = vmatpush1.xpose.msra.mxu0 0.0
        %1009 = vmatprep.subr.mxu0 0.0
        %1010 = vmatpush1.xpose.msra.mxu0 0.0
        %1011 = vmatprep.subr.mxu0 0.0
        %1012 = vmatpush1.xpose.msra.mxu0 0.0
        %1013 = vmatprep.subr.mxu0 0.0
        %1014 = vmatpush1.xpose.msra.mxu0 0.0
        %1015 = vmatprep.subr.mxu0 0.0
        %1016 = vmatpush1.xpose.msra.mxu0 0.0
        %1017 = vmatprep.subr.mxu0 0.0
        %1018 = vmatpush1.xpose.msra.mxu0 0.0
        %1019 = vmatprep.subr.mxu0 0.0
        %1020 = vmatpush1.xpose.msra.mxu0 0.0
        %1021 = vmatprep.subr.mxu0 0.0
        %1022 = vmatpush1.xpose.msra.mxu0 %v991
        %1023 = vmatprep.subr.mxu0 0.0
        %1024 = vmatpush1.xpose.msra.mxu0 %v989
        %1025 = vmatprep.subr.mxu0 0.0
        %1026 = vmatpush2.xpose.msra.mxu0 0.0
        %1027 = vmatprep.subr.mxu0 0.0
        %1028 = vmatpush2.xpose.msra.mxu0 0.0
        %1029 = vmatprep.subr.mxu0 0.0
        %1030 = vmatpush2.xpose.msra.mxu0 0.0
        %1031 = vmatprep.subr.mxu0 0.0
        %1032 = vmatpush2.xpose.msra.mxu0 0.0
        %1033 = vmatprep.subr.mxu0 0.0
        %1034 = vmatpush2.xpose.msra.mxu0 0.0
        %1035 = vmatprep.subr.mxu0 0.0
        %1036 = vmatpush2.xpose.msra.mxu0 0.0
        %1037 = vmatprep.subr.mxu0 0.0
        %1038 = vmatpush2.xpose.msra.mxu0 0.0
        %1039 = vmatprep.subr.mxu0 0.0
        %1040 = vmatpush2.xpose.msra.mxu0 0.0
        %1041 = vmatprep.subr.mxu0 0.0
        %1042 = vmatpush2.xpose.msra.mxu0 0.0
        %1043 = vmatprep.subr.mxu0 0.0
        %1044 = vmatpush2.xpose.msra.mxu0 0.0
        %1045 = vmatprep.subr.mxu0 0.0
        %1046 = vmatpush2.xpose.msra.mxu0 0.0
        %1047 = vmatprep.subr.mxu0 0.0
        %1048 = vmatpush2.xpose.msra.mxu0 0.0
        %1049 = vmatprep.subr.mxu0 0.0
        %1050 = vmatpush2.xpose.msra.mxu0 0.0
        %1051 = vmatprep.subr.mxu0 0.0
        %1052 = vmatpush2.xpose.msra.mxu0 0.0
        %1053 = vmatprep.subr.mxu0 0.0
        %1054 = vmatpush2.xpose.msra.mxu0 0.0
        %1055 = vmatprep.subr.mxu0 0.0
        %1056 = vmatpush2.xpose.msra.mxu0 0.0
        %1057 = vmatprep.mubr.f32.mxu0 0.0
        %1058 = vmatmul.mubr.f32.gmra.mxu0 %v985
        %v1059 = vpop.f32.mrf.mxu0
        %v1060 = vadd.f32 0.0, %v1059
        %v1061 = vpop.f32.mrf.mxu0
        %1062 = vmatprep.mubr.f32.mxu0 0.0
        %1063 = vmatmul.mubr.f32.gmra.mxu0 %v987
        %v1064 = vpop.f32.mrf.mxu0
        %v1065 = vadd.f32 0.0, %v1064
        %v1066 = vpop.f32.mrf.mxu0
        %1067 = vdwg.mxu0
        %v1068 = vmul.f32 %v1060, 0.35355338
        %v1069 = vmul.f32 %v1065, 0.35355338
        %v1070 = vadd.f32 %v1068, %v976
        %v1071 = vadd.f32 %v1069, %v977
        %vm1072 = vcmask 130048
        %v1073 = vsel %vm1072, %v1070, -inf
        %1074 = vmax.xlane.f32.xlu0 %v1073
        %v1075 = vpop.xlane.xlu0 %1074
        %v1076 = vsel %vm1072, %v1071, -inf
        %1077 = vmax.xlane.f32.xlu0 %v1076
        %v1078 = vpop.xlane.xlu0 %1077
        %v1079 = vsub.f32 %v1070, %v1075
        %v1080 = vsub.f32 %v1071, %v1078
        %v1081 = vmul.f32 %v1079, 1.442695
        %v1082 = vpow.pop %v1081
        %v1083 = vmul.f32 %v1080, 1.442695
        %v1084 = vpow.pop %v1083
        %v1085 = vsel %vm1072, %v1082, 0.0
        %1086 = vadd.xlane.f32.xlu0 %v1085
        %v1087 = vpop.xlane.xlu0 %1086
        %v1088 = vsel %vm1072, %v1084, 0.0
        %1089 = vadd.xlane.f32.xlu0 %v1088
        %v1090 = vpop.xlane.xlu0 %1089
        %v1091 = vrcp.pop %v1087
        %v1092 = vrcp.pop %v1090
        %v1093 = vmul.f32 %v1082, %v1091
        %v1094 = vmul.f32 %v1084, %v1092
        %1095 = vrot.lane.b32.xlu0 %v968, 64
        %v1096 = vpop.permute.xlu0 %1095
        %1097 = vrot.lane.b32.xlu0 %v973, 64
        %v1098 = vpop.permute.xlu0 %1097
        %v1102 = vsel %vm1072, %v1093, 0
        %v1105 = vsel %vm1072, %v1094, 0
        %1107 = vmatprep.subr.mxu0 0.0
        %1108 = vmatpush1.msra.mxu0 0.0
        %1109 = vmatprep.subr.mxu0 0.0
        %1110 = vmatpush1.msra.mxu0 0.0
        %1111 = vmatprep.subr.mxu0 0.0
        %1112 = vmatpush1.msra.mxu0 0.0
        %1113 = vmatprep.subr.mxu0 0.0
        %1114 = vmatpush1.msra.mxu0 0.0
        %1115 = vmatprep.subr.mxu0 0.0
        %1116 = vmatpush1.msra.mxu0 0.0
        %1117 = vmatprep.subr.mxu0 0.0
        %1118 = vmatpush1.msra.mxu0 0.0
        %1119 = vmatprep.subr.mxu0 0.0
        %1120 = vmatpush1.msra.mxu0 0.0
        %1121 = vmatprep.subr.mxu0 0.0
        %1122 = vmatpush1.msra.mxu0 0.0
        %1123 = vmatprep.subr.mxu0 0.0
        %1124 = vmatpush1.msra.mxu0 0.0
        %1125 = vmatprep.subr.mxu0 0.0
        %1126 = vmatpush1.msra.mxu0 0.0
        %1127 = vmatprep.subr.mxu0 0.0
        %1128 = vmatpush1.msra.mxu0 0.0
        %1129 = vmatprep.subr.mxu0 0.0
        %1130 = vmatpush1.msra.mxu0 0.0
        %1131 = vmatprep.subr.mxu0 0.0
        %1132 = vmatpush1.msra.mxu0 0.0
        %1133 = vmatprep.subr.mxu0 0.0
        %1134 = vmatpush1.msra.mxu0 0.0
        %1135 = vmatprep.subr.mxu0 0.0
        %1136 = vmatpush1.msra.mxu0 %v1098
        %1137 = vmatprep.subr.mxu0 0.0
        %1138 = vmatpush1.msra.mxu0 %v1096
        %1139 = vmatprep.subr.mxu0 0.0
        %1140 = vmatpush2.msra.mxu0 0.0
        %1141 = vmatprep.subr.mxu0 0.0
        %1142 = vmatpush2.msra.mxu0 0.0
        %1143 = vmatprep.subr.mxu0 0.0
        %1144 = vmatpush2.msra.mxu0 0.0
        %1145 = vmatprep.subr.mxu0 0.0
        %1146 = vmatpush2.msra.mxu0 0.0
        %1147 = vmatprep.subr.mxu0 0.0
        %1148 = vmatpush2.msra.mxu0 0.0
        %1149 = vmatprep.subr.mxu0 0.0
        %1150 = vmatpush2.msra.mxu0 0.0
        %1151 = vmatprep.subr.mxu0 0.0
        %1152 = vmatpush2.msra.mxu0 0.0
        %1153 = vmatprep.subr.mxu0 0.0
        %1154 = vmatpush2.msra.mxu0 0.0
        %1155 = vmatprep.subr.mxu0 0.0
        %1156 = vmatpush2.msra.mxu0 0.0
        %1157 = vmatprep.subr.mxu0 0.0
        %1158 = vmatpush2.msra.mxu0 0.0
        %1159 = vmatprep.subr.mxu0 0.0
        %1160 = vmatpush2.msra.mxu0 0.0
        %1161 = vmatprep.subr.mxu0 0.0
        %1162 = vmatpush2.msra.mxu0 0.0
        %1163 = vmatprep.subr.mxu0 0.0
        %1164 = vmatpush2.msra.mxu0 0.0
        %1165 = vmatprep.subr.mxu0 0.0
        %1166 = vmatpush2.msra.mxu0 0.0
        %1167 = vmatprep.subr.mxu0 0.0
        %1168 = vmatpush2.msra.mxu0 0.0
        %1169 = vmatprep.subr.mxu0 0.0
        %1170 = vmatpush2.msra.mxu0 0.0
        %1171 = vmatprep.mubr.f32.mxu0 0.0
        %1172 = vmatmul.mubr.f32.gmra.mxu0 %v1102
        %v1173 = vpop.f32.mrf.mxu0
        %v1174 = vadd.f32 0.0, %v1173
        %v1175 = vpop.f32.mrf.mxu0
        %1176 = vmatprep.mubr.f32.mxu0 0.0
        %1177 = vmatmul.mubr.f32.gmra.mxu0 %v1105
        %v1178 = vpop.f32.mrf.mxu0
        %v1179 = vadd.f32 0.0, %v1178
        %v1180 = vpop.f32.mrf.mxu0
        %1181 = vdwg.mxu0
        %1182 = vrot.lane.b32.xlu0 %v968, 120
        %v1183 = vpop.permute.xlu0 %1182
        %1184 = vrot.lane.b32.xlu0 %v973, 120
        %v1185 = vpop.permute.xlu0 %1184
        %1186 = vrot.lane.b32.xlu0 %v968, 88
        %v1187 = vpop.permute.xlu0 %1186
        %1188 = vrot.lane.b32.xlu0 %v973, 88
        %v1189 = vpop.permute.xlu0 %1188
        %v1190 = vsel %vm984, %v1183, 0
        %v1192 = vsel %vm984, %v1185, 0
        %v1194 = vsel %vm984, %v1187, 0
        %v1196 = vsel %vm984, %v1189, 0
        %1198 = vmatprep.subr.mxu0 0.0
        %1199 = vmatpush1.xpose.msra.mxu0 0.0
        %1200 = vmatprep.subr.mxu0 0.0
        %1201 = vmatpush1.xpose.msra.mxu0 0.0
        %1202 = vmatprep.subr.mxu0 0.0
        %1203 = vmatpush1.xpose.msra.mxu0 0.0
        %1204 = vmatprep.subr.mxu0 0.0
        %1205 = vmatpush1.xpose.msra.mxu0 0.0
        %1206 = vmatprep.subr.mxu0 0.0
        %1207 = vmatpush1.xpose.msra.mxu0 0.0
        %1208 = vmatprep.subr.mxu0 0.0
        %1209 = vmatpush1.xpose.msra.mxu0 0.0
        %1210 = vmatprep.subr.mxu0 0.0
        %1211 = vmatpush1.xpose.msra.mxu0 0.0
        %1212 = vmatprep.subr.mxu0 0.0
        %1213 = vmatpush1.xpose.msra.mxu0 0.0
        %1214 = vmatprep.subr.mxu0 0.0
        %1215 = vmatpush1.xpose.msra.mxu0 0.0
        %1216 = vmatprep.subr.mxu0 0.0
        %1217 = vmatpush1.xpose.msra.mxu0 0.0
        %1218 = vmatprep.subr.mxu0 0.0
        %1219 = vmatpush1.xpose.msra.mxu0 0.0
        %1220 = vmatprep.subr.mxu0 0.0
        %1221 = vmatpush1.xpose.msra.mxu0 0.0
        %1222 = vmatprep.subr.mxu0 0.0
        %1223 = vmatpush1.xpose.msra.mxu0 0.0
        %1224 = vmatprep.subr.mxu0 0.0
        %1225 = vmatpush1.xpose.msra.mxu0 0.0
        %1226 = vmatprep.subr.mxu0 0.0
        %1227 = vmatpush1.xpose.msra.mxu0 %v1196
        %1228 = vmatprep.subr.mxu0 0.0
        %1229 = vmatpush1.xpose.msra.mxu0 %v1194
        %1230 = vmatprep.subr.mxu0 0.0
        %1231 = vmatpush2.xpose.msra.mxu0 0.0
        %1232 = vmatprep.subr.mxu0 0.0
        %1233 = vmatpush2.xpose.msra.mxu0 0.0
        %1234 = vmatprep.subr.mxu0 0.0
        %1235 = vmatpush2.xpose.msra.mxu0 0.0
        %1236 = vmatprep.subr.mxu0 0.0
        %1237 = vmatpush2.xpose.msra.mxu0 0.0
        %1238 = vmatprep.subr.mxu0 0.0
        %1239 = vmatpush2.xpose.msra.mxu0 0.0
        %1240 = vmatprep.subr.mxu0 0.0
        %1241 = vmatpush2.xpose.msra.mxu0 0.0
        %1242 = vmatprep.subr.mxu0 0.0
        %1243 = vmatpush2.xpose.msra.mxu0 0.0
        %1244 = vmatprep.subr.mxu0 0.0
        %1245 = vmatpush2.xpose.msra.mxu0 0.0
        %1246 = vmatprep.subr.mxu0 0.0
        %1247 = vmatpush2.xpose.msra.mxu0 0.0
        %1248 = vmatprep.subr.mxu0 0.0
        %1249 = vmatpush2.xpose.msra.mxu0 0.0
        %1250 = vmatprep.subr.mxu0 0.0
        %1251 = vmatpush2.xpose.msra.mxu0 0.0
        %1252 = vmatprep.subr.mxu0 0.0
        %1253 = vmatpush2.xpose.msra.mxu0 0.0
        %1254 = vmatprep.subr.mxu0 0.0
        %1255 = vmatpush2.xpose.msra.mxu0 0.0
        %1256 = vmatprep.subr.mxu0 0.0
        %1257 = vmatpush2.xpose.msra.mxu0 0.0
        %1258 = vmatprep.subr.mxu0 0.0
        %1259 = vmatpush2.xpose.msra.mxu0 0.0
        %1260 = vmatprep.subr.mxu0 0.0
        %1261 = vmatpush2.xpose.msra.mxu0 0.0
        %1262 = vmatprep.mubr.f32.mxu0 0.0
        %1263 = vmatmul.mubr.f32.gmra.mxu0 %v1190
        %v1264 = vpop.f32.mrf.mxu0
        %v1265 = vadd.f32 0.0, %v1264
        %v1266 = vpop.f32.mrf.mxu0
        %1267 = vmatprep.mubr.f32.mxu0 0.0
        %1268 = vmatmul.mubr.f32.gmra.mxu0 %v1192
        %v1269 = vpop.f32.mrf.mxu0
        %v1270 = vadd.f32 0.0, %v1269
        %v1271 = vpop.f32.mrf.mxu0
        %1272 = vdwg.mxu0
        %v1273 = vmul.f32 %v1265, 0.35355338
        %v1274 = vmul.f32 %v1270, 0.35355338
        %v1275 = vadd.f32 %v1273, %v976
        %v1276 = vadd.f32 %v1274, %v977
        %v1277 = vsel %vm1072, %v1275, -inf
        %1278 = vmax.xlane.f32.xlu0 %v1277
        %v1279 = vpop.xlane.xlu0 %1278
        %v1280 = vsel %vm1072, %v1276, -inf
        %1281 = vmax.xlane.f32.xlu0 %v1280
        %v1282 = vpop.xlane.xlu0 %1281
        %v1283 = vsub.f32 %v1275, %v1279
        %v1284 = vsub.f32 %v1276, %v1282
        %v1285 = vmul.f32 %v1283, 1.442695
        %v1286 = vpow.pop %v1285
        %v1287 = vmul.f32 %v1284, 1.442695
        %v1288 = vpow.pop %v1287
        %v1289 = vsel %vm1072, %v1286, 0.0
        %1290 = vadd.xlane.f32.xlu0 %v1289
        %v1291 = vpop.xlane.xlu0 %1290
        %v1292 = vsel %vm1072, %v1288, 0.0
        %1293 = vadd.xlane.f32.xlu0 %v1292
        %v1294 = vpop.xlane.xlu0 %1293
        %v1295 = vrcp.pop %v1291
        %v1296 = vrcp.pop %v1294
        %v1297 = vmul.f32 %v1286, %v1295
        %v1298 = vmul.f32 %v1288, %v1296
        %1299 = vrot.lane.b32.xlu0 %v968, 56
        %v1300 = vpop.permute.xlu0 %1299
        %1301 = vrot.lane.b32.xlu0 %v973, 56
        %v1302 = vpop.permute.xlu0 %1301
        %v1306 = vsel %vm1072, %v1297, 0
        %v1309 = vsel %vm1072, %v1298, 0
        %1311 = vmatprep.subr.mxu0 0.0
        %1312 = vmatpush1.msra.mxu0 0.0
        %1313 = vmatprep.subr.mxu0 0.0
        %1314 = vmatpush1.msra.mxu0 0.0
        %1315 = vmatprep.subr.mxu0 0.0
        %1316 = vmatpush1.msra.mxu0 0.0
        %1317 = vmatprep.subr.mxu0 0.0
        %1318 = vmatpush1.msra.mxu0 0.0
        %1319 = vmatprep.subr.mxu0 0.0
        %1320 = vmatpush1.msra.mxu0 0.0
        %1321 = vmatprep.subr.mxu0 0.0
        %1322 = vmatpush1.msra.mxu0 0.0
        %1323 = vmatprep.subr.mxu0 0.0
        %1324 = vmatpush1.msra.mxu0 0.0
        %1325 = vmatprep.subr.mxu0 0.0
        %1326 = vmatpush1.msra.mxu0 0.0
        %1327 = vmatprep.subr.mxu0 0.0
        %1328 = vmatpush1.msra.mxu0 0.0
        %1329 = vmatprep.subr.mxu0 0.0
        %1330 = vmatpush1.msra.mxu0 0.0
        %1331 = vmatprep.subr.mxu0 0.0
        %1332 = vmatpush1.msra.mxu0 0.0
        %1333 = vmatprep.subr.mxu0 0.0
        %1334 = vmatpush1.msra.mxu0 0.0
        %1335 = vmatprep.subr.mxu0 0.0
        %1336 = vmatpush1.msra.mxu0 0.0
        %1337 = vmatprep.subr.mxu0 0.0
        %1338 = vmatpush1.msra.mxu0 0.0
        %1339 = vmatprep.subr.mxu0 0.0
        %1340 = vmatpush1.msra.mxu0 %v1302
        %1341 = vmatprep.subr.mxu0 0.0
        %1342 = vmatpush1.msra.mxu0 %v1300
        %1343 = vmatprep.subr.mxu0 0.0
        %1344 = vmatpush2.msra.mxu0 0.0
        %1345 = vmatprep.subr.mxu0 0.0
        %1346 = vmatpush2.msra.mxu0 0.0
        %1347 = vmatprep.subr.mxu0 0.0
        %1348 = vmatpush2.msra.mxu0 0.0
        %1349 = vmatprep.subr.mxu0 0.0
        %1350 = vmatpush2.msra.mxu0 0.0
        %1351 = vmatprep.subr.mxu0 0.0
        %1352 = vmatpush2.msra.mxu0 0.0
        %1353 = vmatprep.subr.mxu0 0.0
        %1354 = vmatpush2.msra.mxu0 0.0
        %1355 = vmatprep.subr.mxu0 0.0
        %1356 = vmatpush2.msra.mxu0 0.0
        %1357 = vmatprep.subr.mxu0 0.0
        %1358 = vmatpush2.msra.mxu0 0.0
        %1359 = vmatprep.subr.mxu0 0.0
        %1360 = vmatpush2.msra.mxu0 0.0
        %1361 = vmatprep.subr.mxu0 0.0
        %1362 = vmatpush2.msra.mxu0 0.0
        %1363 = vmatprep.subr.mxu0 0.0
        %1364 = vmatpush2.msra.mxu0 0.0
        %1365 = vmatprep.subr.mxu0 0.0
        %1366 = vmatpush2.msra.mxu0 0.0
        %1367 = vmatprep.subr.mxu0 0.0
        %1368 = vmatpush2.msra.mxu0 0.0
        %1369 = vmatprep.subr.mxu0 0.0
        %1370 = vmatpush2.msra.mxu0 0.0
        %1371 = vmatprep.subr.mxu0 0.0
        %1372 = vmatpush2.msra.mxu0 0.0
        %1373 = vmatprep.subr.mxu0 0.0
        %1374 = vmatpush2.msra.mxu0 0.0
        %1375 = vmatprep.mubr.f32.mxu0 0.0
        %1376 = vmatmul.mubr.f32.gmra.mxu0 %v1306
        %v1377 = vpop.f32.mrf.mxu0
        %v1378 = vadd.f32 0.0, %v1377
        %v1379 = vpop.f32.mrf.mxu0
        %1380 = vmatprep.mubr.f32.mxu0 0.0
        %1381 = vmatmul.mubr.f32.gmra.mxu0 %v1309
        %v1382 = vpop.f32.mrf.mxu0
        %v1383 = vadd.f32 0.0, %v1382
        %v1384 = vpop.f32.mrf.mxu0
        %1385 = vdwg.mxu0
        %1386 = vrot.lane.b32.xlu0 %v968, 112
        %v1387 = vpop.permute.xlu0 %1386
        %1388 = vrot.lane.b32.xlu0 %v973, 112
        %v1389 = vpop.permute.xlu0 %1388
        %1390 = vrot.lane.b32.xlu0 %v968, 80
        %v1391 = vpop.permute.xlu0 %1390
        %1392 = vrot.lane.b32.xlu0 %v973, 80
        %v1393 = vpop.permute.xlu0 %1392
        %v1394 = vsel %vm984, %v1387, 0
        %v1396 = vsel %vm984, %v1389, 0
        %v1398 = vsel %vm984, %v1391, 0
        %v1400 = vsel %vm984, %v1393, 0
        %1402 = vmatprep.subr.mxu0 0.0
        %1403 = vmatpush1.xpose.msra.mxu0 0.0
        %1404 = vmatprep.subr.mxu0 0.0
        %1405 = vmatpush1.xpose.msra.mxu0 0.0
        %1406 = vmatprep.subr.mxu0 0.0
        %1407 = vmatpush1.xpose.msra.mxu0 0.0
        %1408 = vmatprep.subr.mxu0 0.0
        %1409 = vmatpush1.xpose.msra.mxu0 0.0
        %1410 = vmatprep.subr.mxu0 0.0
        %1411 = vmatpush1.xpose.msra.mxu0 0.0
        %1412 = vmatprep.subr.mxu0 0.0
        %1413 = vmatpush1.xpose.msra.mxu0 0.0
        %1414 = vmatprep.subr.mxu0 0.0
        %1415 = vmatpush1.xpose.msra.mxu0 0.0
        %1416 = vmatprep.subr.mxu0 0.0
        %1417 = vmatpush1.xpose.msra.mxu0 0.0
        %1418 = vmatprep.subr.mxu0 0.0
        %1419 = vmatpush1.xpose.msra.mxu0 0.0
        %1420 = vmatprep.subr.mxu0 0.0
        %1421 = vmatpush1.xpose.msra.mxu0 0.0
        %1422 = vmatprep.subr.mxu0 0.0
        %1423 = vmatpush1.xpose.msra.mxu0 0.0
        %1424 = vmatprep.subr.mxu0 0.0
        %1425 = vmatpush1.xpose.msra.mxu0 0.0
        %1426 = vmatprep.subr.mxu0 0.0
        %1427 = vmatpush1.xpose.msra.mxu0 0.0
        %1428 = vmatprep.subr.mxu0 0.0
        %1429 = vmatpush1.xpose.msra.mxu0 0.0
        %1430 = vmatprep.subr.mxu0 0.0
        %1431 = vmatpush1.xpose.msra.mxu0 %v1400
        %1432 = vmatprep.subr.mxu0 0.0
        %1433 = vmatpush1.xpose.msra.mxu0 %v1398
        %1434 = vmatprep.subr.mxu0 0.0
        %1435 = vmatpush2.xpose.msra.mxu0 0.0
        %1436 = vmatprep.subr.mxu0 0.0
        %1437 = vmatpush2.xpose.msra.mxu0 0.0
        %1438 = vmatprep.subr.mxu0 0.0
        %1439 = vmatpush2.xpose.msra.mxu0 0.0
        %1440 = vmatprep.subr.mxu0 0.0
        %1441 = vmatpush2.xpose.msra.mxu0 0.0
        %1442 = vmatprep.subr.mxu0 0.0
        %1443 = vmatpush2.xpose.msra.mxu0 0.0
        %1444 = vmatprep.subr.mxu0 0.0
        %1445 = vmatpush2.xpose.msra.mxu0 0.0
        %1446 = vmatprep.subr.mxu0 0.0
        %1447 = vmatpush2.xpose.msra.mxu0 0.0
        %1448 = vmatprep.subr.mxu0 0.0
        %1449 = vmatpush2.xpose.msra.mxu0 0.0
        %1450 = vmatprep.subr.mxu0 0.0
        %1451 = vmatpush2.xpose.msra.mxu0 0.0
        %1452 = vmatprep.subr.mxu0 0.0
        %1453 = vmatpush2.xpose.msra.mxu0 0.0
        %1454 = vmatprep.subr.mxu0 0.0
        %1455 = vmatpush2.xpose.msra.mxu0 0.0
        %1456 = vmatprep.subr.mxu0 0.0
        %1457 = vmatpush2.xpose.msra.mxu0 0.0
        %1458 = vmatprep.subr.mxu0 0.0
        %1459 = vmatpush2.xpose.msra.mxu0 0.0
        %1460 = vmatprep.subr.mxu0 0.0
        %1461 = vmatpush2.xpose.msra.mxu0 0.0
        %1462 = vmatprep.subr.mxu0 0.0
        %1463 = vmatpush2.xpose.msra.mxu0 0.0
        %1464 = vmatprep.subr.mxu0 0.0
        %1465 = vmatpush2.xpose.msra.mxu0 0.0
        %1466 = vmatprep.mubr.f32.mxu0 0.0
        %1467 = vmatmul.mubr.f32.gmra.mxu0 %v1394
        %v1468 = vpop.f32.mrf.mxu0
        %v1469 = vadd.f32 0.0, %v1468
        %v1470 = vpop.f32.mrf.mxu0
        %1471 = vmatprep.mubr.f32.mxu0 0.0
        %1472 = vmatmul.mubr.f32.gmra.mxu0 %v1396
        %v1473 = vpop.f32.mrf.mxu0
        %v1474 = vadd.f32 0.0, %v1473
        %v1475 = vpop.f32.mrf.mxu0
        %1476 = vdwg.mxu0
        %v1477 = vmul.f32 %v1469, 0.35355338
        %v1478 = vmul.f32 %v1474, 0.35355338
        %v1479 = vadd.f32 %v1477, %v976
        %v1480 = vadd.f32 %v1478, %v977
        %v1481 = vsel %vm1072, %v1479, -inf
        %1482 = vmax.xlane.f32.xlu0 %v1481
        %v1483 = vpop.xlane.xlu0 %1482
        %v1484 = vsel %vm1072, %v1480, -inf
        %1485 = vmax.xlane.f32.xlu0 %v1484
        %v1486 = vpop.xlane.xlu0 %1485
        %v1487 = vsub.f32 %v1479, %v1483
        %v1488 = vsub.f32 %v1480, %v1486
        %v1489 = vmul.f32 %v1487, 1.442695
        %v1490 = vpow.pop %v1489
        %v1491 = vmul.f32 %v1488, 1.442695
        %v1492 = vpow.pop %v1491
        %v1493 = vsel %vm1072, %v1490, 0.0
        %1494 = vadd.xlane.f32.xlu0 %v1493
        %v1495 = vpop.xlane.xlu0 %1494
        %v1496 = vsel %vm1072, %v1492, 0.0
        %1497 = vadd.xlane.f32.xlu0 %v1496
        %v1498 = vpop.xlane.xlu0 %1497
        %v1499 = vrcp.pop %v1495
        %v1500 = vrcp.pop %v1498
        %v1501 = vmul.f32 %v1490, %v1499
        %v1502 = vmul.f32 %v1492, %v1500
        %1503 = vrot.lane.b32.xlu0 %v968, 48
        %v1504 = vpop.permute.xlu0 %1503
        %1505 = vrot.lane.b32.xlu0 %v973, 48
        %v1506 = vpop.permute.xlu0 %1505
        %v1510 = vsel %vm1072, %v1501, 0
        %v1513 = vsel %vm1072, %v1502, 0
        %1515 = vmatprep.subr.mxu0 0.0
        %1516 = vmatpush1.msra.mxu0 0.0
        %1517 = vmatprep.subr.mxu0 0.0
        %1518 = vmatpush1.msra.mxu0 0.0
        %1519 = vmatprep.subr.mxu0 0.0
        %1520 = vmatpush1.msra.mxu0 0.0
        %1521 = vmatprep.subr.mxu0 0.0
        %1522 = vmatpush1.msra.mxu0 0.0
        %1523 = vmatprep.subr.mxu0 0.0
        %1524 = vmatpush1.msra.mxu0 0.0
        %1525 = vmatprep.subr.mxu0 0.0
        %1526 = vmatpush1.msra.mxu0 0.0
        %1527 = vmatprep.subr.mxu0 0.0
        %1528 = vmatpush1.msra.mxu0 0.0
        %1529 = vmatprep.subr.mxu0 0.0
        %1530 = vmatpush1.msra.mxu0 0.0
        %1531 = vmatprep.subr.mxu0 0.0
        %1532 = vmatpush1.msra.mxu0 0.0
        %1533 = vmatprep.subr.mxu0 0.0
        %1534 = vmatpush1.msra.mxu0 0.0
        %1535 = vmatprep.subr.mxu0 0.0
        %1536 = vmatpush1.msra.mxu0 0.0
        %1537 = vmatprep.subr.mxu0 0.0
        %1538 = vmatpush1.msra.mxu0 0.0
        %1539 = vmatprep.subr.mxu0 0.0
        %1540 = vmatpush1.msra.mxu0 0.0
        %1541 = vmatprep.subr.mxu0 0.0
        %1542 = vmatpush1.msra.mxu0 0.0
        %1543 = vmatprep.subr.mxu0 0.0
        %1544 = vmatpush1.msra.mxu0 %v1506
        %1545 = vmatprep.subr.mxu0 0.0
        %1546 = vmatpush1.msra.mxu0 %v1504
        %1547 = vmatprep.subr.mxu0 0.0
        %1548 = vmatpush2.msra.mxu0 0.0
        %1549 = vmatprep.subr.mxu0 0.0
        %1550 = vmatpush2.msra.mxu0 0.0
        %1551 = vmatprep.subr.mxu0 0.0
        %1552 = vmatpush2.msra.mxu0 0.0
        %1553 = vmatprep.subr.mxu0 0.0
        %1554 = vmatpush2.msra.mxu0 0.0
        %1555 = vmatprep.subr.mxu0 0.0
        %1556 = vmatpush2.msra.mxu0 0.0
        %1557 = vmatprep.subr.mxu0 0.0
        %1558 = vmatpush2.msra.mxu0 0.0
        %1559 = vmatprep.subr.mxu0 0.0
        %1560 = vmatpush2.msra.mxu0 0.0
        %1561 = vmatprep.subr.mxu0 0.0
        %1562 = vmatpush2.msra.mxu0 0.0
        %1563 = vmatprep.subr.mxu0 0.0
        %1564 = vmatpush2.msra.mxu0 0.0
        %1565 = vmatprep.subr.mxu0 0.0
        %1566 = vmatpush2.msra.mxu0 0.0
        %1567 = vmatprep.subr.mxu0 0.0
        %1568 = vmatpush2.msra.mxu0 0.0
        %1569 = vmatprep.subr.mxu0 0.0
        %1570 = vmatpush2.msra.mxu0 0.0
        %1571 = vmatprep.subr.mxu0 0.0
        %1572 = vmatpush2.msra.mxu0 0.0
        %1573 = vmatprep.subr.mxu0 0.0
        %1574 = vmatpush2.msra.mxu0 0.0
        %1575 = vmatprep.subr.mxu0 0.0
        %1576 = vmatpush2.msra.mxu0 0.0
        %1577 = vmatprep.subr.mxu0 0.0
        %1578 = vmatpush2.msra.mxu0 0.0
        %1579 = vmatprep.mubr.f32.mxu0 0.0
        %1580 = vmatmul.mubr.f32.gmra.mxu0 %v1510
        %v1581 = vpop.f32.mrf.mxu0
        %v1582 = vadd.f32 0.0, %v1581
        %v1583 = vpop.f32.mrf.mxu0
        %1584 = vmatprep.mubr.f32.mxu0 0.0
        %1585 = vmatmul.mubr.f32.gmra.mxu0 %v1513
        %v1586 = vpop.f32.mrf.mxu0
        %v1587 = vadd.f32 0.0, %v1586
        %v1588 = vpop.f32.mrf.mxu0
        %1589 = vdwg.mxu0
        %1590 = vrot.lane.b32.xlu0 %v968, 104
        %v1591 = vpop.permute.xlu0 %1590
        %1592 = vrot.lane.b32.xlu0 %v973, 104
        %v1593 = vpop.permute.xlu0 %1592
        %1594 = vrot.lane.b32.xlu0 %v968, 72
        %v1595 = vpop.permute.xlu0 %1594
        %1596 = vrot.lane.b32.xlu0 %v973, 72
        %v1597 = vpop.permute.xlu0 %1596
        %v1598 = vsel %vm984, %v1591, 0
        %v1600 = vsel %vm984, %v1593, 0
        %v1602 = vsel %vm984, %v1595, 0
        %v1604 = vsel %vm984, %v1597, 0
        %1606 = vmatprep.subr.mxu0 0.0
        %1607 = vmatpush1.xpose.msra.mxu0 0.0
        %1608 = vmatprep.subr.mxu0 0.0
        %1609 = vmatpush1.xpose.msra.mxu0 0.0
        %1610 = vmatprep.subr.mxu0 0.0
        %1611 = vmatpush1.xpose.msra.mxu0 0.0
        %1612 = vmatprep.subr.mxu0 0.0
        %1613 = vmatpush1.xpose.msra.mxu0 0.0
        %1614 = vmatprep.subr.mxu0 0.0
        %1615 = vmatpush1.xpose.msra.mxu0 0.0
        %1616 = vmatprep.subr.mxu0 0.0
        %1617 = vmatpush1.xpose.msra.mxu0 0.0
        %1618 = vmatprep.subr.mxu0 0.0
        %1619 = vmatpush1.xpose.msra.mxu0 0.0
        %1620 = vmatprep.subr.mxu0 0.0
        %1621 = vmatpush1.xpose.msra.mxu0 0.0
        %1622 = vmatprep.subr.mxu0 0.0
        %1623 = vmatpush1.xpose.msra.mxu0 0.0
        %1624 = vmatprep.subr.mxu0 0.0
        %1625 = vmatpush1.xpose.msra.mxu0 0.0
        %1626 = vmatprep.subr.mxu0 0.0
        %1627 = vmatpush1.xpose.msra.mxu0 0.0
        %1628 = vmatprep.subr.mxu0 0.0
        %1629 = vmatpush1.xpose.msra.mxu0 0.0
        %1630 = vmatprep.subr.mxu0 0.0
        %1631 = vmatpush1.xpose.msra.mxu0 0.0
        %1632 = vmatprep.subr.mxu0 0.0
        %1633 = vmatpush1.xpose.msra.mxu0 0.0
        %1634 = vmatprep.subr.mxu0 0.0
        %1635 = vmatpush1.xpose.msra.mxu0 %v1604
        %1636 = vmatprep.subr.mxu0 0.0
        %1637 = vmatpush1.xpose.msra.mxu0 %v1602
        %1638 = vmatprep.subr.mxu0 0.0
        %1639 = vmatpush2.xpose.msra.mxu0 0.0
        %1640 = vmatprep.subr.mxu0 0.0
        %1641 = vmatpush2.xpose.msra.mxu0 0.0
        %1642 = vmatprep.subr.mxu0 0.0
        %1643 = vmatpush2.xpose.msra.mxu0 0.0
        %1644 = vmatprep.subr.mxu0 0.0
        %1645 = vmatpush2.xpose.msra.mxu0 0.0
        %1646 = vmatprep.subr.mxu0 0.0
        %1647 = vmatpush2.xpose.msra.mxu0 0.0
        %1648 = vmatprep.subr.mxu0 0.0
        %1649 = vmatpush2.xpose.msra.mxu0 0.0
        %1650 = vmatprep.subr.mxu0 0.0
        %1651 = vmatpush2.xpose.msra.mxu0 0.0
        %1652 = vmatprep.subr.mxu0 0.0
        %1653 = vmatpush2.xpose.msra.mxu0 0.0
        %1654 = vmatprep.subr.mxu0 0.0
        %1655 = vmatpush2.xpose.msra.mxu0 0.0
        %1656 = vmatprep.subr.mxu0 0.0
        %1657 = vmatpush2.xpose.msra.mxu0 0.0
        %1658 = vmatprep.subr.mxu0 0.0
        %1659 = vmatpush2.xpose.msra.mxu0 0.0
        %1660 = vmatprep.subr.mxu0 0.0
        %1661 = vmatpush2.xpose.msra.mxu0 0.0
        %1662 = vmatprep.subr.mxu0 0.0
        %1663 = vmatpush2.xpose.msra.mxu0 0.0
        %1664 = vmatprep.subr.mxu0 0.0
        %1665 = vmatpush2.xpose.msra.mxu0 0.0
        %1666 = vmatprep.subr.mxu0 0.0
        %1667 = vmatpush2.xpose.msra.mxu0 0.0
        %1668 = vmatprep.subr.mxu0 0.0
        %1669 = vmatpush2.xpose.msra.mxu0 0.0
        %1670 = vmatprep.mubr.f32.mxu0 0.0
        %1671 = vmatmul.mubr.f32.gmra.mxu0 %v1598
        %v1672 = vpop.f32.mrf.mxu0
        %v1673 = vadd.f32 0.0, %v1672
        %v1674 = vpop.f32.mrf.mxu0
        %1675 = vmatprep.mubr.f32.mxu0 0.0
        %1676 = vmatmul.mubr.f32.gmra.mxu0 %v1600
        %v1677 = vpop.f32.mrf.mxu0
        %v1678 = vadd.f32 0.0, %v1677
        %v1679 = vpop.f32.mrf.mxu0
        %1680 = vdwg.mxu0
        %v1681 = vmul.f32 %v1673, 0.35355338
        %v1682 = vmul.f32 %v1678, 0.35355338
        %v1683 = vadd.f32 %v1681, %v976
        %v1684 = vadd.f32 %v1682, %v977
        %v1685 = vsel %vm1072, %v1683, -inf
        %1686 = vmax.xlane.f32.xlu0 %v1685
        %v1687 = vpop.xlane.xlu0 %1686
        %v1688 = vsel %vm1072, %v1684, -inf
        %1689 = vmax.xlane.f32.xlu0 %v1688
        %v1690 = vpop.xlane.xlu0 %1689
        %v1691 = vsub.f32 %v1683, %v1687
        %v1692 = vsub.f32 %v1684, %v1690
        %v1693 = vmul.f32 %v1691, 1.442695
        %v1694 = vpow.pop %v1693
        %v1695 = vmul.f32 %v1692, 1.442695
        %v1696 = vpow.pop %v1695
        %v1697 = vsel %vm1072, %v1694, 0.0
        %1698 = vadd.xlane.f32.xlu0 %v1697
        %v1699 = vpop.xlane.xlu0 %1698
        %v1700 = vsel %vm1072, %v1696, 0.0
        %1701 = vadd.xlane.f32.xlu0 %v1700
        %v1702 = vpop.xlane.xlu0 %1701
        %v1703 = vrcp.pop %v1699
        %v1704 = vrcp.pop %v1702
        %v1705 = vmul.f32 %v1694, %v1703
        %v1706 = vmul.f32 %v1696, %v1704
        %1707 = vrot.lane.b32.xlu0 %v968, 40
        %v1708 = vpop.permute.xlu0 %1707
        %1709 = vrot.lane.b32.xlu0 %v973, 40
        %v1710 = vpop.permute.xlu0 %1709
        %v1714 = vsel %vm1072, %v1705, 0
        %v1717 = vsel %vm1072, %v1706, 0
        %1719 = vmatprep.subr.mxu0 0.0
        %1720 = vmatpush1.msra.mxu0 0.0
        %1721 = vmatprep.subr.mxu0 0.0
        %1722 = vmatpush1.msra.mxu0 0.0
        %1723 = vmatprep.subr.mxu0 0.0
        %1724 = vmatpush1.msra.mxu0 0.0
        %1725 = vmatprep.subr.mxu0 0.0
        %1726 = vmatpush1.msra.mxu0 0.0
        %1727 = vmatprep.subr.mxu0 0.0
        %1728 = vmatpush1.msra.mxu0 0.0
        %1729 = vmatprep.subr.mxu0 0.0
        %1730 = vmatpush1.msra.mxu0 0.0
        %1731 = vmatprep.subr.mxu0 0.0
        %1732 = vmatpush1.msra.mxu0 0.0
        %1733 = vmatprep.subr.mxu0 0.0
        %1734 = vmatpush1.msra.mxu0 0.0
        %1735 = vmatprep.subr.mxu0 0.0
        %1736 = vmatpush1.msra.mxu0 0.0
        %1737 = vmatprep.subr.mxu0 0.0
        %1738 = vmatpush1.msra.mxu0 0.0
        %1739 = vmatprep.subr.mxu0 0.0
        %1740 = vmatpush1.msra.mxu0 0.0
        %1741 = vmatprep.subr.mxu0 0.0
        %1742 = vmatpush1.msra.mxu0 0.0
        %1743 = vmatprep.subr.mxu0 0.0
        %1744 = vmatpush1.msra.mxu0 0.0
        %1745 = vmatprep.subr.mxu0 0.0
        %1746 = vmatpush1.msra.mxu0 0.0
        %1747 = vmatprep.subr.mxu0 0.0
        %1748 = vmatpush1.msra.mxu0 %v1710
        %1749 = vmatprep.subr.mxu0 0.0
        %1750 = vmatpush1.msra.mxu0 %v1708
        %1751 = vmatprep.subr.mxu0 0.0
        %1752 = vmatpush2.msra.mxu0 0.0
        %1753 = vmatprep.subr.mxu0 0.0
        %1754 = vmatpush2.msra.mxu0 0.0
        %1755 = vmatprep.subr.mxu0 0.0
        %1756 = vmatpush2.msra.mxu0 0.0
        %1757 = vmatprep.subr.mxu0 0.0
        %1758 = vmatpush2.msra.mxu0 0.0
        %1759 = vmatprep.subr.mxu0 0.0
        %1760 = vmatpush2.msra.mxu0 0.0
        %1761 = vmatprep.subr.mxu0 0.0
        %1762 = vmatpush2.msra.mxu0 0.0
        %1763 = vmatprep.subr.mxu0 0.0
        %1764 = vmatpush2.msra.mxu0 0.0
        %1765 = vmatprep.subr.mxu0 0.0
        %1766 = vmatpush2.msra.mxu0 0.0
        %1767 = vmatprep.subr.mxu0 0.0
        %1768 = vmatpush2.msra.mxu0 0.0
        %1769 = vmatprep.subr.mxu0 0.0
        %1770 = vmatpush2.msra.mxu0 0.0
        %1771 = vmatprep.subr.mxu0 0.0
        %1772 = vmatpush2.msra.mxu0 0.0
        %1773 = vmatprep.subr.mxu0 0.0
        %1774 = vmatpush2.msra.mxu0 0.0
        %1775 = vmatprep.subr.mxu0 0.0
        %1776 = vmatpush2.msra.mxu0 0.0
        %1777 = vmatprep.subr.mxu0 0.0
        %1778 = vmatpush2.msra.mxu0 0.0
        %1779 = vmatprep.subr.mxu0 0.0
        %1780 = vmatpush2.msra.mxu0 0.0
        %1781 = vmatprep.subr.mxu0 0.0
        %1782 = vmatpush2.msra.mxu0 0.0
        %1783 = vmatprep.mubr.f32.mxu0 0.0
        %1784 = vmatmul.mubr.f32.gmra.mxu0 %v1714
        %v1785 = vpop.f32.mrf.mxu0
        %v1786 = vadd.f32 0.0, %v1785
        %v1787 = vpop.f32.mrf.mxu0
        %1788 = vmatprep.mubr.f32.mxu0 0.0
        %1789 = vmatmul.mubr.f32.gmra.mxu0 %v1717
        %v1790 = vpop.f32.mrf.mxu0
        %v1791 = vadd.f32 0.0, %v1790
        %v1792 = vpop.f32.mrf.mxu0
        %1793 = vdwg.mxu0
        %1796 = vrot.lane.b32.xlu0 %v1378, 8
        %v1797 = vpop.permute.xlu0 %1796
        %1798 = vrot.lane.b32.xlu0 %v1383, 8
        %v1799 = vpop.permute.xlu0 %1798
        %1804 = vrot.lane.b32.xlu0 %v1582, 16
        %v1805 = vpop.permute.xlu0 %1804
        %1806 = vrot.lane.b32.xlu0 %v1587, 16
        %v1807 = vpop.permute.xlu0 %1806
        %1812 = vrot.lane.b32.xlu0 %v1786, 24
        %v1813 = vpop.permute.xlu0 %1812
        %1814 = vrot.lane.b32.xlu0 %v1791, 24
        %v1815 = vpop.permute.xlu0 %1814
        %v1818 = vsel %vm984, %v1174, %v1797
        %v1819 = vsel %vm984, %v1179, %v1799
        %v1820 = vsel %vm1072, %v1818, %v1805
        %v1821 = vsel %vm1072, %v1819, %v1807
        %vm1822 = vcmask 195584
        %v1823 = vsel %vm1822, %v1820, %v1813
        %v1824 = vsel %vm1822, %v1821, %v1815
        %v1825 = vld [vmem:[%s693] sm:$0xff]
        %v1826 = vld [vmem:[%s693 + $0x8] sm:$0xff]
        %v1827 = vld [vmem:[%s693 + $0x10] sm:$0xff]
        %v1828 = vld [vmem:[%s693 + $0x18] sm:$0xff]
        %v1829 = vld [vmem:[%s803] sm:$0x1]
        %v1831 = vlaneseq
        %v1832 = vshrl.u32 %v1831, 7
        %v1833 = vsub.s32 0, %v1832
        %v1834 = vrot.slane %v1829, %v1833
        %v1837 = vsel %vm894, %v1823, 0
        %v1840 = vsel %vm894, %v1824, 0
        %1842 = vmatprep.subr.mxu0 0.0
        %1843 = vmatpush1.msra.mxu0 0.0
        %1844 = vmatprep.subr.mxu0 0.0
        %1845 = vmatpush1.msra.mxu0 0.0
        %1846 = vmatprep.subr.mxu0 0.0
        %1847 = vmatpush1.msra.mxu0 0.0
        %1848 = vmatprep.subr.mxu0 0.0
        %1849 = vmatpush1.msra.mxu0 0.0
        %1850 = vmatprep.subr.mxu0 0.0
        %1851 = vmatpush1.msra.mxu0 0.0
        %1852 = vmatprep.subr.mxu0 0.0
        %1853 = vmatpush1.msra.mxu0 0.0
        %1854 = vmatprep.subr.mxu0 0.0
        %1855 = vmatpush1.msra.mxu0 0.0
        %1856 = vmatprep.subr.mxu0 0.0
        %1857 = vmatpush1.msra.mxu0 0.0
        %1858 = vmatprep.subr.mxu0 0.0
        %1859 = vmatpush1.msra.mxu0 0.0
        %1860 = vmatprep.subr.mxu0 0.0
        %1861 = vmatpush1.msra.mxu0 0.0
        %1862 = vmatprep.subr.mxu0 0.0
        %1863 = vmatpush1.msra.mxu0 0.0
        %1864 = vmatprep.subr.mxu0 0.0
        %1865 = vmatpush1.msra.mxu0 0.0
        %1866 = vmatprep.subr.mxu0 0.0
        %1867 = vmatpush1.msra.mxu0 %v1828
        %1868 = vmatprep.subr.mxu0 0.0
        %1869 = vmatpush1.msra.mxu0 %v1827
        %1870 = vmatprep.subr.mxu0 0.0
        %1871 = vmatpush1.msra.mxu0 %v1826
        %1872 = vmatprep.subr.mxu0 0.0
        %1873 = vmatpush1.msra.mxu0 %v1825
        %1874 = vmatprep.subr.mxu0 0.0
        %1875 = vmatpush2.msra.mxu0 0.0
        %1876 = vmatprep.subr.mxu0 0.0
        %1877 = vmatpush2.msra.mxu0 0.0
        %1878 = vmatprep.subr.mxu0 0.0
        %1879 = vmatpush2.msra.mxu0 0.0
        %1880 = vmatprep.subr.mxu0 0.0
        %1881 = vmatpush2.msra.mxu0 0.0
        %1882 = vmatprep.subr.mxu0 0.0
        %1883 = vmatpush2.msra.mxu0 0.0
        %1884 = vmatprep.subr.mxu0 0.0
        %1885 = vmatpush2.msra.mxu0 0.0
        %1886 = vmatprep.subr.mxu0 0.0
        %1887 = vmatpush2.msra.mxu0 0.0
        %1888 = vmatprep.subr.mxu0 0.0
        %1889 = vmatpush2.msra.mxu0 0.0
        %1890 = vmatprep.subr.mxu0 0.0
        %1891 = vmatpush2.msra.mxu0 0.0
        %1892 = vmatprep.subr.mxu0 0.0
        %1893 = vmatpush2.msra.mxu0 0.0
        %1894 = vmatprep.subr.mxu0 0.0
        %1895 = vmatpush2.msra.mxu0 0.0
        %1896 = vmatprep.subr.mxu0 0.0
        %1897 = vmatpush2.msra.mxu0 0.0
        %1898 = vmatprep.subr.mxu0 0.0
        %1899 = vmatpush2.msra.mxu0 0.0
        %1900 = vmatprep.subr.mxu0 0.0
        %1901 = vmatpush2.msra.mxu0 0.0
        %1902 = vmatprep.subr.mxu0 0.0
        %1903 = vmatpush2.msra.mxu0 0.0
        %1904 = vmatprep.subr.mxu0 0.0
        %1905 = vmatpush2.msra.mxu0 0.0
        %1906 = vmatprep.mubr.f32.mxu0 0.0
        %1907 = vmatmul.mubr.f32.gmra.mxu0 %v1837
        %v1908 = vpop.f32.mrf.mxu0
        %v1909 = vadd.f32 %v1834, %v1908
        %v1910 = vpop.f32.mrf.mxu0
        %1911 = vmatprep.mubr.f32.mxu0 0.0
        %1912 = vmatmul.mubr.f32.gmra.mxu0 %v1840
        %v1913 = vpop.f32.mrf.mxu0
        %v1914 = vadd.f32 %v1834, %v1913
        %v1915 = vpop.f32.mrf.mxu0
        %1916 = vdwg.mxu0
        %v1917 = vadd.f32 %v881, %v1909
        %v1918 = vadd.f32 %v882, %v1914
        %v1919 = vld [vmem:[%s806] sm:$0x1]
        %v1920 = vld [vmem:[%s809] sm:$0x1]
        %v1921 = vsel %vm894, %v1917, 0.0
        %1922 = vadd.xlane.f32.xlu0 %v1921
        %v1923 = vpop.xlane.xlu0 %1922
        %v1924 = vsel %vm894, %v1918, 0.0
        %1925 = vadd.xlane.f32.xlu0 %v1924
        %v1926 = vpop.xlane.xlu0 %1925
        %v1927 = vrcp.pop 32.0
        %v1928 = vmul.f32 %v1923, %v1927
        %v1929 = vmul.f32 %v1926, %v1927
        %v1930 = vsub.f32 %v1917, %v1928
        %v1931 = vsub.f32 %v1918, %v1929
        %v1932 = vmul.f32 %v1930, %v1930
        %v1933 = vmul.f32 %v1931, %v1931
        %v1934 = vsel %vm894, %v1932, 0.0
        %1935 = vadd.xlane.f32.xlu0 %v1934
        %v1936 = vpop.xlane.xlu0 %1935
        %v1937 = vsel %vm894, %v1933, 0.0
        %1938 = vadd.xlane.f32.xlu0 %v1937
        %v1939 = vpop.xlane.xlu0 %1938
        %v1940 = vmul.f32 %v1936, %v1927
        %v1941 = vmul.f32 %v1939, %v1927
        %v1942 = vadd.f32 %v1940, 1e-12
        %v1943 = vadd.f32 %v1941, 1e-12
        %v1944 = vrsqrt.pop %v1942
        %v1945 = vrsqrt.pop %v1943
        %v1946 = vmul.f32 %v1930, %v1944
        %v1947 = vmul.f32 %v1931, %v1945
        %v1949 = vlaneseq
        %v1950 = vshrl.u32 %v1949, 7
        %v1951 = vsub.s32 0, %v1950
        %v1952 = vrot.slane %v1919, %v1951
        %v1954 = vmul.f32 %v1946, %v1952
        %v1955 = vmul.f32 %v1947, %v1952
        %v1957 = vlaneseq
        %v1958 = vshrl.u32 %v1957, 7
        %v1959 = vsub.s32 0, %v1958
        %v1960 = vrot.slane %v1920, %v1959
        %v1962 = vadd.f32 %v1954, %v1960
        %v1963 = vadd.f32 %v1955, %v1960
        %v1964 = vld [vmem:[%s702] sm:$0xff]
        %v1965 = vld [vmem:[%s702 + $0x8] sm:$0xff]
        %v1966 = vld [vmem:[%s702 + $0x10] sm:$0xff]
        %v1967 = vld [vmem:[%s702 + $0x18] sm:$0xff]
        %v1968 = vld [vmem:[%s812] sm:$0x1]
        %v1970 = vlaneseq
        %v1971 = vshrl.u32 %v1970, 7
        %v1972 = vsub.s32 0, %v1971
        %v1973 = vrot.slane %v1968, %v1972
        %v1976 = vsel %vm894, %v1962, 0
        %v1979 = vsel %vm894, %v1963, 0
        %1981 = vmatprep.subr.mxu0 0.0
        %1982 = vmatpush1.msra.mxu0 0.0
        %1983 = vmatprep.subr.mxu0 0.0
        %1984 = vmatpush1.msra.mxu0 0.0
        %1985 = vmatprep.subr.mxu0 0.0
        %1986 = vmatpush1.msra.mxu0 0.0
        %1987 = vmatprep.subr.mxu0 0.0
        %1988 = vmatpush1.msra.mxu0 0.0
        %1989 = vmatprep.subr.mxu0 0.0
        %1990 = vmatpush1.msra.mxu0 0.0
        %1991 = vmatprep.subr.mxu0 0.0
        %1992 = vmatpush1.msra.mxu0 0.0
        %1993 = vmatprep.subr.mxu0 0.0
        %1994 = vmatpush1.msra.mxu0 0.0
        %1995 = vmatprep.subr.mxu0 0.0
        %1996 = vmatpush1.msra.mxu0 0.0
        %1997 = vmatprep.subr.mxu0 0.0
        %1998 = vmatpush1.msra.mxu0 0.0
        %1999 = vmatprep.subr.mxu0 0.0
        %2000 = vmatpush1.msra.mxu0 0.0
        %2001 = vmatprep.subr.mxu0 0.0
        %2002 = vmatpush1.msra.mxu0 0.0
        %2003 = vmatprep.subr.mxu0 0.0
        %2004 = vmatpush1.msra.mxu0 0.0
        %2005 = vmatprep.subr.mxu0 0.0
        %2006 = vmatpush1.msra.mxu0 %v1967
        %2007 = vmatprep.subr.mxu0 0.0
        %2008 = vmatpush1.msra.mxu0 %v1966
        %2009 = vmatprep.subr.mxu0 0.0
        %2010 = vmatpush1.msra.mxu0 %v1965
        %2011 = vmatprep.subr.mxu0 0.0
        %2012 = vmatpush1.msra.mxu0 %v1964
        %2013 = vmatprep.subr.mxu0 0.0
        %2014 = vmatpush2.msra.mxu0 0.0
        %2015 = vmatprep.subr.mxu0 0.0
        %2016 = vmatpush2.msra.mxu0 0.0
        %2017 = vmatprep.subr.mxu0 0.0
        %2018 = vmatpush2.msra.mxu0 0.0
        %2019 = vmatprep.subr.mxu0 0.0
        %2020 = vmatpush2.msra.mxu0 0.0
        %2021 = vmatprep.subr.mxu0 0.0
        %2022 = vmatpush2.msra.mxu0 0.0
        %2023 = vmatprep.subr.mxu0 0.0
        %2024 = vmatpush2.msra.mxu0 0.0
        %2025 = vmatprep.subr.mxu0 0.0
        %2026 = vmatpush2.msra.mxu0 0.0
        %2027 = vmatprep.subr.mxu0 0.0
        %2028 = vmatpush2.msra.mxu0 0.0
        %2029 = vmatprep.subr.mxu0 0.0
        %2030 = vmatpush2.msra.mxu0 0.0
        %2031 = vmatprep.subr.mxu0 0.0
        %2032 = vmatpush2.msra.mxu0 0.0
        %2033 = vmatprep.subr.mxu0 0.0
        %2034 = vmatpush2.msra.mxu0 0.0
        %2035 = vmatprep.subr.mxu0 0.0
        %2036 = vmatpush2.msra.mxu0 0.0
        %2037 = vmatprep.subr.mxu0 0.0
        %2038 = vmatpush2.msra.mxu0 0.0
        %2039 = vmatprep.subr.mxu0 0.0
        %2040 = vmatpush2.msra.mxu0 0.0
        %2041 = vmatprep.subr.mxu0 0.0
        %2042 = vmatpush2.msra.mxu0 0.0
        %2043 = vmatprep.subr.mxu0 0.0
        %2044 = vmatpush2.msra.mxu0 0.0
        %2045 = vmatprep.mubr.f32.mxu0 0.0
        %2046 = vmatmul.mubr.f32.gmra.mxu0 %v1976
        %v2047 = vpop.f32.mrf.mxu0
        %v2048 = vadd.f32 %v1973, %v2047
        %v2049 = vpop.f32.mrf.mxu0
        %2050 = vmatprep.mubr.f32.mxu0 0.0
        %2051 = vmatmul.mubr.f32.gmra.mxu0 %v1979
        %v2052 = vpop.f32.mrf.mxu0
        %v2053 = vadd.f32 %v1973, %v2052
        %v2054 = vpop.f32.mrf.mxu0
        %2055 = vdwg.mxu0
        %v2056 = vmul.f32 %v2048, 0.5
        %v2057 = vmul.f32 %v2053, 0.5
        %v2058 = vmul.f32 %v2048, 0.044715
        %v2059 = vmul.f32 %v2053, 0.044715
        %v2060 = vmul.f32 %v2058, %v2048
        %v2061 = vmul.f32 %v2059, %v2053
        %v2062 = vmul.f32 %v2060, %v2048
        %v2063 = vmul.f32 %v2061, %v2053
        %v2064 = vadd.f32 %v2048, %v2062
        %v2065 = vadd.f32 %v2053, %v2063
        %v2066 = vmul.f32 %v2064, 0.7978846
        %v2067 = vmul.f32 %v2065, 0.7978846
        %v2068 = vtanh.pop %v2066
        %v2069 = vtanh.pop %v2067
        %v2070 = vadd.f32 %v2068, 1.0
        %v2071 = vadd.f32 %v2069, 1.0
        %v2072 = vmul.f32 %v2056, %v2070
        %v2073 = vmul.f32 %v2057, %v2071
        %v2074 = vld [vmem:[%s817] sm:$0xff]
        %v2075 = vld [vmem:[%s817 + $0x8] sm:$0xff]
        %v2076 = vld [vmem:[%s817 + $0x10] sm:$0xff]
        %v2077 = vld [vmem:[%s817 + $0x18] sm:$0xff]
        %v2078 = vld [vmem:[%s817 + $0x20] sm:$0xff]
        %v2079 = vld [vmem:[%s817 + $0x28] sm:$0xff]
        %v2080 = vld [vmem:[%s817 + $0x30] sm:$0xff]
        %v2081 = vld [vmem:[%s817 + $0x38] sm:$0xff]
        %v2082 = vld [vmem:[%s820] sm:$0x1]
        %v2084 = vlaneseq
        %v2085 = vshrl.u32 %v2084, 7
        %v2086 = vsub.s32 0, %v2085
        %v2087 = vrot.slane %v2082, %v2086
        %vm2089 = vcmask 523264
        %v2091 = vsel %vm2089, %v2072, 0
        %v2094 = vsel %vm2089, %v2073, 0
        %2096 = vmatprep.subr.mxu0 0.0
        %2097 = vmatpush1.msra.mxu0 0.0
        %2098 = vmatprep.subr.mxu0 0.0
        %2099 = vmatpush1.msra.mxu0 0.0
        %2100 = vmatprep.subr.mxu0 0.0
        %2101 = vmatpush1.msra.mxu0 0.0
        %2102 = vmatprep.subr.mxu0 0.0
        %2103 = vmatpush1.msra.mxu0 0.0
        %2104 = vmatprep.subr.mxu0 0.0
        %2105 = vmatpush1.msra.mxu0 0.0
        %2106 = vmatprep.subr.mxu0 0.0
        %2107 = vmatpush1.msra.mxu0 0.0
        %2108 = vmatprep.subr.mxu0 0.0
        %2109 = vmatpush1.msra.mxu0 0.0
        %2110 = vmatprep.subr.mxu0 0.0
        %2111 = vmatpush1.msra.mxu0 0.0
        %2112 = vmatprep.subr.mxu0 0.0
        %2113 = vmatpush1.msra.mxu0 %v2081
        %2114 = vmatprep.subr.mxu0 0.0
        %2115 = vmatpush1.msra.mxu0 %v2080
        %2116 = vmatprep.subr.mxu0 0.0
        %2117 = vmatpush1.msra.mxu0 %v2079
        %2118 = vmatprep.subr.mxu0 0.0
        %2119 = vmatpush1.msra.mxu0 %v2078
        %2120 = vmatprep.subr.mxu0 0.0
        %2121 = vmatpush1.msra.mxu0 %v2077
        %2122 = vmatprep.subr.mxu0 0.0
        %2123 = vmatpush1.msra.mxu0 %v2076
        %2124 = vmatprep.subr.mxu0 0.0
        %2125 = vmatpush1.msra.mxu0 %v2075
        %2126 = vmatprep.subr.mxu0 0.0
        %2127 = vmatpush1.msra.mxu0 %v2074
        %2128 = vmatprep.subr.mxu0 0.0
        %2129 = vmatpush2.msra.mxu0 0.0
        %2130 = vmatprep.subr.mxu0 0.0
        %2131 = vmatpush2.msra.mxu0 0.0
        %2132 = vmatprep.subr.mxu0 0.0
        %2133 = vmatpush2.msra.mxu0 0.0
        %2134 = vmatprep.subr.mxu0 0.0
        %2135 = vmatpush2.msra.mxu0 0.0
        %2136 = vmatprep.subr.mxu0 0.0
        %2137 = vmatpush2.msra.mxu0 0.0
        %2138 = vmatprep.subr.mxu0 0.0
        %2139 = vmatpush2.msra.mxu0 0.0
        %2140 = vmatprep.subr.mxu0 0.0
        %2141 = vmatpush2.msra.mxu0 0.0
        %2142 = vmatprep.subr.mxu0 0.0
        %2143 = vmatpush2.msra.mxu0 0.0
        %2144 = vmatprep.subr.mxu0 0.0
        %2145 = vmatpush2.msra.mxu0 0.0
        %2146 = vmatprep.subr.mxu0 0.0
        %2147 = vmatpush2.msra.mxu0 0.0
        %2148 = vmatprep.subr.mxu0 0.0
        %2149 = vmatpush2.msra.mxu0 0.0
        %2150 = vmatprep.subr.mxu0 0.0
        %2151 = vmatpush2.msra.mxu0 0.0
        %2152 = vmatprep.subr.mxu0 0.0
        %2153 = vmatpush2.msra.mxu0 0.0
        %2154 = vmatprep.subr.mxu0 0.0
        %2155 = vmatpush2.msra.mxu0 0.0
        %2156 = vmatprep.subr.mxu0 0.0
        %2157 = vmatpush2.msra.mxu0 0.0
        %2158 = vmatprep.subr.mxu0 0.0
        %2159 = vmatpush2.msra.mxu0 0.0
        %2160 = vmatprep.mubr.f32.mxu0 0.0
        %2161 = vmatmul.mubr.f32.gmra.mxu0 %v2091
        %v2162 = vpop.f32.mrf.mxu0
        %v2163 = vadd.f32 %v2087, %v2162
        %v2164 = vpop.f32.mrf.mxu0
        %2165 = vmatprep.mubr.f32.mxu0 0.0
        %2166 = vmatmul.mubr.f32.gmra.mxu0 %v2094
        %v2167 = vpop.f32.mrf.mxu0
        %v2168 = vadd.f32 %v2087, %v2167
        %v2169 = vpop.f32.mrf.mxu0
        %2170 = vdwg.mxu0
        %v2171 = vadd.f32 %v1962, %v2163
        %v2172 = vadd.f32 %v1963, %v2168
        %v2173 = vld [vmem:[%s823] sm:$0x1]
        %v2174 = vld [vmem:[%s826] sm:$0x1]
        %v2175 = vsel %vm894, %v2171, 0.0
        %2176 = vadd.xlane.f32.xlu0 %v2175
        %v2177 = vpop.xlane.xlu0 %2176
        %v2178 = vsel %vm894, %v2172, 0.0
        %2179 = vadd.xlane.f32.xlu0 %v2178
        %v2180 = vpop.xlane.xlu0 %2179
        %v2181 = vmul.f32 %v2177, %v1927
        %v2182 = vmul.f32 %v2180, %v1927
        %v2183 = vsub.f32 %v2171, %v2181
        %v2184 = vsub.f32 %v2172, %v2182
        %v2185 = vmul.f32 %v2183, %v2183
        %v2186 = vmul.f32 %v2184, %v2184
        %v2187 = vsel %vm894, %v2185, 0.0
        %2188 = vadd.xlane.f32.xlu0 %v2187
        %v2189 = vpop.xlane.xlu0 %2188
        %v2190 = vsel %vm894, %v2186, 0.0
        %2191 = vadd.xlane.f32.xlu0 %v2190
        %v2192 = vpop.xlane.xlu0 %2191
        %v2193 = vmul.f32 %v2189, %v1927
        %v2194 = vmul.f32 %v2192, %v1927
        %v2195 = vadd.f32 %v2193, 1e-12
        %v2196 = vadd.f32 %v2194, 1e-12
        %v2197 = vrsqrt.pop %v2195
        %v2198 = vrsqrt.pop %v2196
        %v2199 = vmul.f32 %v2183, %v2197
        %v2200 = vmul.f32 %v2184, %v2198
        %v2202 = vlaneseq
        %v2203 = vshrl.u32 %v2202, 7
        %v2204 = vsub.s32 0, %v2203
        %v2205 = vrot.slane %v2173, %v2204
        %v2207 = vmul.f32 %v2199, %v2205
        %v2208 = vmul.f32 %v2200, %v2205
        %v2210 = vlaneseq
        %v2211 = vshrl.u32 %v2210, 7
        %v2212 = vsub.s32 0, %v2211
        %v2213 = vrot.slane %v2174, %v2212
        %v2215 = vadd.f32 %v2207, %v2213
        %v2216 = vadd.f32 %v2208, %v2213
        %2217 = vst.msk [vmem:[#allocation2] sm:$0xff] %vm894, %v2215
        %2218 = vst.msk [vmem:[#allocation2 + $0x8] sm:$0xff] %vm894, %v2216
        %v2219 = vld [vmem:[%s16] sm:$0xff]
        %v2220 = vld [vmem:[%s16 + $0x8] sm:$0xff]
        %v2221 = vld [vmem:[%s16 + $0x10] sm:$0xff]
        %v2222 = vld [vmem:[%s16 + $0x18] sm:$0xff]
        %v2223 = vld [vmem:[%s17] sm:$0x1]
        %v2225 = vlaneseq
        %v2226 = vshrl.u32 %v2225, 7
        %v2227 = vsub.s32 0, %v2226
        %v2228 = vrot.slane %v2223, %v2227
        %v2231 = vsel %vm894, %v2215, 0
        %v2234 = vsel %vm894, %v2216, 0
        %2236 = vmatprep.subr.mxu0 0.0
        %2237 = vmatpush1.msra.mxu0 0.0
        %2238 = vmatprep.subr.mxu0 0.0
        %2239 = vmatpush1.msra.mxu0 0.0
        %2240 = vmatprep.subr.mxu0 0.0
        %2241 = vmatpush1.msra.mxu0 0.0
        %2242 = vmatprep.subr.mxu0 0.0
        %2243 = vmatpush1.msra.mxu0 0.0
        %2244 = vmatprep.subr.mxu0 0.0
        %2245 = vmatpush1.msra.mxu0 0.0
        %2246 = vmatprep.subr.mxu0 0.0
        %2247 = vmatpush1.msra.mxu0 0.0
        %2248 = vmatprep.subr.mxu0 0.0
        %2249 = vmatpush1.msra.mxu0 0.0
        %2250 = vmatprep.subr.mxu0 0.0
        %2251 = vmatpush1.msra.mxu0 0.0
        %2252 = vmatprep.subr.mxu0 0.0
        %2253 = vmatpush1.msra.mxu0 0.0
        %2254 = vmatprep.subr.mxu0 0.0
        %2255 = vmatpush1.msra.mxu0 0.0
        %2256 = vmatprep.subr.mxu0 0.0
        %2257 = vmatpush1.msra.mxu0 0.0
        %2258 = vmatprep.subr.mxu0 0.0
        %2259 = vmatpush1.msra.mxu0 0.0
        %2260 = vmatprep.subr.mxu0 0.0
        %2261 = vmatpush1.msra.mxu0 %v2222
        %2262 = vmatprep.subr.mxu0 0.0
        %2263 = vmatpush1.msra.mxu0 %v2221
        %2264 = vmatprep.subr.mxu0 0.0
        %2265 = vmatpush1.msra.mxu0 %v2220
        %2266 = vmatprep.subr.mxu0 0.0
        %2267 = vmatpush1.msra.mxu0 %v2219
        %2268 = vmatprep.subr.mxu0 0.0
        %2269 = vmatpush2.msra.mxu0 0.0
        %2270 = vmatprep.subr.mxu0 0.0
        %2271 = vmatpush2.msra.mxu0 0.0
        %2272 = vmatprep.subr.mxu0 0.0
        %2273 = vmatpush2.msra.mxu0 0.0
        %2274 = vmatprep.subr.mxu0 0.0
        %2275 = vmatpush2.msra.mxu0 0.0
        %2276 = vmatprep.subr.mxu0 0.0
        %2277 = vmatpush2.msra.mxu0 0.0
        %2278 = vmatprep.subr.mxu0 0.0
        %2279 = vmatpush2.msra.mxu0 0.0
        %2280 = vmatprep.subr.mxu0 0.0
        %2281 = vmatpush2.msra.mxu0 0.0
        %2282 = vmatprep.subr.mxu0 0.0
        %2283 = vmatpush2.msra.mxu0 0.0
        %2284 = vmatprep.subr.mxu0 0.0
        %2285 = vmatpush2.msra.mxu0 0.0
        %2286 = vmatprep.subr.mxu0 0.0
        %2287 = vmatpush2.msra.mxu0 0.0
        %2288 = vmatprep.subr.mxu0 0.0
        %2289 = vmatpush2.msra.mxu0 0.0
        %2290 = vmatprep.subr.mxu0 0.0
        %2291 = vmatpush2.msra.mxu0 0.0
        %2292 = vmatprep.subr.mxu0 0.0
        %2293 = vmatpush2.msra.mxu0 0.0
        %2294 = vmatprep.subr.mxu0 0.0
        %2295 = vmatpush2.msra.mxu0 0.0
        %2296 = vmatprep.subr.mxu0 0.0
        %2297 = vmatpush2.msra.mxu0 0.0
        %2298 = vmatprep.subr.mxu0 0.0
        %2299 = vmatpush2.msra.mxu0 0.0
        %2300 = vmatprep.mubr.f32.mxu0 0.0
        %2301 = vmatmul.mubr.f32.gmra.mxu0 %v2231
        %v2302 = vpop.f32.mrf.mxu0
        %v2303 = vadd.f32 %v2228, %v2302
        %v2304 = vpop.f32.mrf.mxu0
        %2305 = vmatprep.mubr.f32.mxu0 0.0
        %2306 = vmatmul.mubr.f32.gmra.mxu0 %v2234
        %v2307 = vpop.f32.mrf.mxu0
        %v2308 = vadd.f32 %v2228, %v2307
        %v2309 = vpop.f32.mrf.mxu0
        %2310 = vdwg.mxu0
        %v2311 = vld [vmem:[%s18] sm:$0x1]
        %v2312 = vld [vmem:[%s19] sm:$0x1]
        %v2313 = vsel %vm894, %v2303, 0.0
        %2314 = vadd.xlane.f32.xlu0 %v2313
        %v2315 = vpop.xlane.xlu0 %2314
        %v2316 = vsel %vm894, %v2308, 0.0
        %2317 = vadd.xlane.f32.xlu0 %v2316
        %v2318 = vpop.xlane.xlu0 %2317
        %v2319 = vmul.f32 %v2315, %v1927
        %v2320 = vmul.f32 %v2318, %v1927
        %v2321 = vsub.f32 %v2303, %v2319
        %v2322 = vsub.f32 %v2308, %v2320
        %v2323 = vmul.f32 %v2321, %v2321
        %v2324 = vmul.f32 %v2322, %v2322
        %v2325 = vsel %vm894, %v2323, 0.0
        %2326 = vadd.xlane.f32.xlu0 %v2325
        %v2327 = vpop.xlane.xlu0 %2326
        %v2328 = vsel %vm894, %v2324, 0.0
        %2329 = vadd.xlane.f32.xlu0 %v2328
        %v2330 = vpop.xlane.xlu0 %2329
        %v2331 = vmul.f32 %v2327, %v1927
        %v2332 = vmul.f32 %v2330, %v1927
        %v2333 = vadd.f32 %v2331, 1e-12
        %v2334 = vadd.f32 %v2332, 1e-12
        %v2335 = vrsqrt.pop %v2333
        %v2336 = vrsqrt.pop %v2334
        %v2337 = vmul.f32 %v2321, %v2335
        %v2338 = vmul.f32 %v2322, %v2336
        %v2340 = vlaneseq
        %v2341 = vshrl.u32 %v2340, 7
        %v2342 = vsub.s32 0, %v2341
        %v2343 = vrot.slane %v2311, %v2342
        %v2345 = vmul.f32 %v2337, %v2343
        %v2346 = vmul.f32 %v2338, %v2343
        %v2348 = vlaneseq
        %v2349 = vshrl.u32 %v2348, 7
        %v2350 = vsub.s32 0, %v2349
        %v2351 = vrot.slane %v2312, %v2350
        %v2353 = vadd.f32 %v2345, %v2351
        %v2354 = vadd.f32 %v2346, %v2351
        %2355 = vst.msk [vmem:[%s20] sm:$0xff] %vm894, %v2353
        %2356 = vst.msk [vmem:[%s20 + $0x8] sm:$0xff] %vm894, %v2354
        // Predicated region
        $region113: #{fctr_text_encoder_forward.1} parent=99 // pred_check
          %p2357 = pneg %p530
        $region114: #{fctr_text_encoder_forward.1} parent=99 // pred_check_branch
          %2359 = sbr.rel (%p2357) target = $region116
        $region115: #{fctr_text_encoder_forward.1} parent=99 // pred_region
          _
        $region116: #{fctr_text_encoder_forward.1} parent=99 // pred_fallthru
          _
        // Predicated region
        $region117: #{fctr_text_encoder_forward.1} parent=99 // pred_check
          %p2360 = pneg %p530
        $region118: #{fctr_text_encoder_forward.1} parent=99 // pred_check_branch
          %2362 = sbr.rel (%p2360) target = $region120
        $region119: #{fctr_text_encoder_forward.1} parent=99 // pred_region
          _
        $region120: #{fctr_text_encoder_forward.1} parent=99 // pred_fallthru
          _
      $region100: #{fctr_text_encoder_forward.1} parent=5 // pred_fallthru
        _
      %p2363 = scmp.le.s32.totalorder 2, %s32
      // Predicated region
      $region121: #{fctr_text_encoder_forward.1} parent=5 // pred_check
        %p2364 = pneg %p2363
      $region122: #{fctr_text_encoder_forward.1} parent=5 // pred_check_branch
        %2366 = sbr.rel (%p2364) target = $region124
      $region123: #{fctr_text_encoder_forward.1} parent=5 // pred_region
        %s2367 = ssub.s32 %s32, 2
      $region124: #{fctr_text_encoder_forward.1} parent=5 // pred_fallthru
        _
    $region6: #{fctr_text_encoder_forward.1} parent=1 // loop_footer
      %s36 = sadd.s32 1, %s32
    $region7: #{fctr_text_encoder_forward.1} parent=1 // loop_footer_branch
      %31 = sbr.rel target = $region3
    $region8: #{fctr_text_encoder_forward.1} parent=1 // loop_exit
      _
    %2368 = vsyncpa [#allocation4], 1
    %s2369 = scalar_lea.sflag [#allocation4], 1
    %2370 = vsyncpa %s2369, 1
    %2371 = vsyncpa [#allocation6], 1
    %s2372 = scalar_lea.sflag [#allocation6], 1
    %2373 = vsyncpa %s2372, 1

</llo_original>
